<compile_context>
chip_gen: v7x
topology: tpu7x:2x2x1
jax: 0.10.0
libtpu: 0.0.40
codegen_flags: <defaults>
</compile_context>

<pallas_src>
import math

import jax
import jax.numpy as jnp
import numpy as np
from jax.experimental import pallas as pl
from jax.experimental.pallas import tpu as pltpu

# ---- config (small, consistent with the module's semantics) ----
BATCH = 2
SEQ = 8
HIDDEN = 32
NUM_HEADS = 4
HEAD_DIM = HIDDEN // NUM_HEADS
LAYER_NORM_EPS = 1e-5  # RobertaConfig default


def _attention_kernel(h_ref, wqkv_ref, bqkv_ref, wo_ref, bo_ref,
                      gamma_ref, beta_ref, out_ref):
    """Single invocation: the whole problem lives in VMEM.  h_ref is (B*S, H)."""
    h = h_ref[...]                                            # (B*S, H) f32

    # --- fused Q/K/V projection (one MXU matmul). wqkv columns are packed
    #     head-major (q_h0|k_h0|v_h0|q_h1|...) with 1/sqrt(head_dim) folded
    #     into the Q columns, so no per-head slicing or scaling is needed. ---
    qkv = jnp.dot(h, wqkv_ref[...], preferred_element_type=jnp.float32) + bqkv_ref[...]

    # --- one transpose to the fused (B*NUM_HEADS, S, 3*head_dim) layout ---
    qkv = qkv.reshape(BATCH, SEQ, NUM_HEADS, 3 * HEAD_DIM)
    qkv = jnp.transpose(qkv, (0, 2, 1, 3)).reshape(BATCH * NUM_HEADS, SEQ, 3 * HEAD_DIM)
    q = qkv[:, :, 0 * HEAD_DIM:1 * HEAD_DIM]                  # (B*NH, S, hd)
    k = qkv[:, :, 1 * HEAD_DIM:2 * HEAD_DIM]
    v = qkv[:, :, 2 * HEAD_DIM:3 * HEAD_DIM]

    # --- two batched matmuls over the fused (B*NH) batch axis; softmax
    #     reductions done once on the combined (B*NH, S, S) tensor.
    #     Exact normalization: EUP slot has huge slack at this size. ---
    s = jnp.einsum("bqd,bkd->bqk", q, k, preferred_element_type=jnp.float32)
    s = s - jnp.max(s, axis=-1, keepdims=True)
    e = jnp.exp(s)
    p = e / jnp.sum(e, axis=-1, keepdims=True)
    ctx = jnp.einsum("bqk,bkd->bqd", p, v, preferred_element_type=jnp.float32)

    # --- back to (B*S, H): single transpose, no concat ---
    ctx = ctx.reshape(BATCH, NUM_HEADS, SEQ, HEAD_DIM)
    ctx = jnp.transpose(ctx, (0, 2, 1, 3)).reshape(BATCH * SEQ, HIDDEN)

    # --- RobertaSelfOutput: dense -> dropout(identity) -> residual LayerNorm ---
    dense = jnp.dot(ctx, wo_ref[...], preferred_element_type=jnp.float32) + bo_ref[...]
    x = dense + h
    mean = jnp.mean(x, axis=-1, keepdims=True)
    xc = x - mean
    var = jnp.mean(xc * xc, axis=-1, keepdims=True)
    inv = jax.lax.rsqrt(var + LAYER_NORM_EPS)
    out_ref[...] = xc * inv * gamma_ref[...] + beta_ref[...]


def probe_roberta_attention(hidden_states, packed):
    """hidden_states: (B, S, H) f32. packed: dict from pack_params()."""
    B, S, H = hidden_states.shape
    h2d = hidden_states.reshape(B * S, H)        # wrapper-side reshape (free in HBM)
    vmem = pl.BlockSpec(memory_space=pltpu.MemorySpace.VMEM)  # whole array in VMEM
    out2d = pl.pallas_call(
        _attention_kernel,
        out_shape=jax.ShapeDtypeStruct((B * S, H), jnp.float32),
        in_specs=[vmem] * 7,
        out_specs=vmem,
    )(
        h2d,
        packed["wqkv"], packed["bqkv"],
        packed["wo"], packed["bo"],
        packed["gamma"], packed["beta"],
    )
    return out2d.reshape(B, S, H)


def pack_params(p):
    """One-time (offline) packing.

    Fuses Wq/Wk/Wv into a single (H, 3H) weight whose columns are head-major
    (q_h0 | k_h0 | v_h0 | q_h1 | ...), and folds the 1/sqrt(head_dim) score
    scale into the Q columns/bias, so the kernel's qkv output reshapes
    contiguously to (B, S, NUM_HEADS, 3*HEAD_DIM) with no per-head slicing.
    """
    scale = 1.0 / math.sqrt(HEAD_DIM)
    wq_s, bq_s = p["wq"] * scale, p["bq"] * scale
    w_blocks, b_blocks = [], []
    for hh in range(NUM_HEADS):
        sl = slice(hh * HEAD_DIM, (hh + 1) * HEAD_DIM)
        w_blocks += [wq_s[:, sl], p["wk"][:, sl], p["wv"][:, sl]]
        b_blocks += [bq_s[:, sl], p["bk"][:, sl], p["bv"][:, sl]]
    return {"wqkv": jnp.concatenate(w_blocks, axis=1),   # (H, 3H), head-major
            "bqkv": jnp.concatenate(b_blocks, axis=1),   # (1, 3H), head-major
            "wo": p["wo"], "bo": p["bo"],
            "gamma": p["gamma"], "beta": p["beta"]}


def _reference(hidden_states, params):
    """Pure-JAX reference mirroring the PyTorch forward (eval mode, unfused params)."""
    B, S, H = hidden_states.shape

    def lin(x, w, b):
        return x @ w + b[0]

    q = lin(hidden_states, params["wq"], params["bq"])
    k = lin(hidden_states, params["wk"], params["bk"])
    v = lin(hidden_states, params["wv"], params["bv"])

    def split(x):  # (B,S,H) -> (B,nh,S,hd)
        return x.reshape(B, S, NUM_HEADS, HEAD_DIM).transpose(0, 2, 1, 3)

    q, k, v = split(q), split(k), split(v)
    scores = jnp.einsum("bhqd,bhkd->bhqk", q, k) / math.sqrt(HEAD_DIM)
    probs = jax.nn.softmax(scores, axis=-1)
    ctx = jnp.einsum("bhqk,bhkd->bhqd", probs, v)
    ctx = ctx.transpose(0, 2, 1, 3).reshape(B, S, H)
    dense = lin(ctx, params["wo"], params["bo"])
    x = dense + hidden_states
    mean = jnp.mean(x, axis=-1, keepdims=True)
    var = jnp.mean((x - mean) ** 2, axis=-1, keepdims=True)
    xn = (x - mean) / jnp.sqrt(var + LAYER_NORM_EPS)
    return xn * params["gamma"][0] + params["beta"][0]


def _init_params(key):
    ks = jax.random.split(key, 9)
    scale = 0.02
    return {
        "wq": scale * jax.random.normal(ks[0], (HIDDEN, HIDDEN), jnp.float32),
        "bq": scale * jax.random.normal(ks[1], (1, HIDDEN), jnp.float32),
        "wk": scale * jax.random.normal(ks[2], (HIDDEN, HIDDEN), jnp.float32),
        "bk": scale * jax.random.normal(ks[3], (1, HIDDEN), jnp.float32),
        "wv": scale * jax.random.normal(ks[4], (HIDDEN, HIDDEN), jnp.float32),
        "bv": scale * jax.random.normal(ks[5], (1, HIDDEN), jnp.float32),
        "wo": scale * jax.random.normal(ks[6], (HIDDEN, HIDDEN), jnp.float32),
        "bo": scale * jax.random.normal(ks[7], (1, HIDDEN), jnp.float32),
        "gamma": jnp.ones((1, HIDDEN), jnp.float32),
        "beta": jnp.zeros((1, HIDDEN), jnp.float32),
    }


if __name__ == "__main__":
    key = jax.random.PRNGKey(0)
    k_h, k_p = jax.random.split(key)
    hidden_states = jax.random.normal(k_h, (BATCH, SEQ, HIDDEN), jnp.float32)
    params = _init_params(k_p)
    packed = jax.tree_util.tree_map(jax.block_until_ready, pack_params(params))  # build once

    out = probe_roberta_attention(hidden_states, packed)
    out = jax.block_until_ready(out)

    ref = jax.block_until_ready(_reference(hidden_states, params))
    np.testing.assert_allclose(np.asarray(out), np.asarray(ref), rtol=2e-4, atol=2e-4)

    print("KERNEL_OK")
</pallas_src>

<mosaic_0001>
module attributes {stable_mosaic.version = 11 : i64} {
  func.func @_attention_kernel(%arg0: memref<16x32xf32, #tpu.memory_space<vmem>>, %arg1: memref<32x96xf32, #tpu.memory_space<vmem>>, %arg2: memref<1x96xf32, #tpu.memory_space<vmem>>, %arg3: memref<32x32xf32, #tpu.memory_space<vmem>>, %arg4: memref<1x32xf32, #tpu.memory_space<vmem>>, %arg5: memref<1x32xf32, #tpu.memory_space<vmem>>, %arg6: memref<1x32xf32, #tpu.memory_space<vmem>>, %arg7: memref<16x32xf32, #tpu.memory_space<vmem>>) attributes {dimension_semantics = [], scalar_prefetch = 0 : i64, scratch_operands = 0 : i64, tpu.core_type = #tpu.core_type<tc>} {
    %c0 = arith.constant 0 : index
    %c0_0 = arith.constant 0 : index
    %0 = vector.load %arg0[%c0, %c0_0] : memref<16x32xf32, #tpu.memory_space<vmem>>, vector<16x32xf32>
    %c0_1 = arith.constant 0 : index
    %c0_2 = arith.constant 0 : index
    %1 = vector.load %arg1[%c0_1, %c0_2] : memref<32x96xf32, #tpu.memory_space<vmem>>, vector<32x96xf32>
    %cst = arith.constant dense<0.000000e+00> : vector<16x96xf32>
    %2 = tpu.matmul %0, %1, %cst {dimension_numbers = #tpu.dot_dimension_numbers<[1], [0], [0], [1], [0, 0, 1, 1], [], []>} : vector<16x32xf32>, vector<32x96xf32>, vector<16x96xf32> -> vector<16x96xf32>
    %c0_3 = arith.constant 0 : index
    %c0_4 = arith.constant 0 : index
    %3 = vector.load %arg2[%c0_3, %c0_4] : memref<1x96xf32, #tpu.memory_space<vmem>>, vector<1x96xf32>
    %4 = vector.broadcast %3 : vector<1x96xf32> to vector<16x96xf32>
    %5 = arith.addf %2, %4 : vector<16x96xf32>
    %6 = vector.shape_cast %5 : vector<16x96xf32> to vector<2x8x4x24xf32>
    %7 = tpu.transpose %6, [0, 2, 1, 3] : vector<2x8x4x24xf32> -> vector<2x4x8x24xf32>
    %8 = vector.shape_cast %7 : vector<2x4x8x24xf32> to vector<8x8x24xf32>
    %9 = vector.extract_strided_slice %8 {offsets = [0, 0, 0], sizes = [8, 8, 8], strides = [1, 1, 1]} : vector<8x8x24xf32> to vector<8x8x8xf32>
    %10 = vector.extract_strided_slice %8 {offsets = [0, 0, 8], sizes = [8, 8, 8], strides = [1, 1, 1]} : vector<8x8x24xf32> to vector<8x8x8xf32>
    %11 = vector.extract_strided_slice %8 {offsets = [0, 0, 16], sizes = [8, 8, 8], strides = [1, 1, 1]} : vector<8x8x24xf32> to vector<8x8x8xf32>
    "tpu.trace_start"() <{level = 10 : i32, message = "bqd,bkd->bqk"}> : () -> ()
    %cst_5 = arith.constant dense<0.000000e+00> : vector<8x8x8xf32>
    %12 = tpu.matmul %9, %10, %cst_5 {dimension_numbers = #tpu.dot_dimension_numbers<[2], [2], [1], [1], [0, 0, 0, 1, 1, 1], [0], [0]>} : vector<8x8x8xf32>, vector<8x8x8xf32>, vector<8x8x8xf32> -> vector<8x8x8xf32>
    "tpu.trace_stop"() : () -> ()
    %cst_6 = arith.constant dense<0xFF800000> : vector<8x8xf32>
    %13 = vector.multi_reduction <maximumf>, %12, %cst_6 [2] : vector<8x8x8xf32> to vector<8x8xf32>
    %14 = vector.shape_cast %13 : vector<8x8xf32> to vector<8x8x1xf32>
    %15 = vector.broadcast %14 : vector<8x8x1xf32> to vector<8x8x8xf32>
    %16 = arith.subf %12, %15 : vector<8x8x8xf32>
    %17 = math.exp %16 : vector<8x8x8xf32>
    %cst_7 = arith.constant dense<0.000000e+00> : vector<8x8xf32>
    %18 = vector.multi_reduction <add>, %17, %cst_7 [2] : vector<8x8x8xf32> to vector<8x8xf32>
    %19 = vector.shape_cast %18 : vector<8x8xf32> to vector<8x8x1xf32>
    %20 = vector.broadcast %19 : vector<8x8x1xf32> to vector<8x8x8xf32>
    %21 = arith.divf %17, %20 : vector<8x8x8xf32>
    "tpu.trace_start"() <{level = 10 : i32, message = "bqk,bkd->bqd"}> : () -> ()
    %cst_8 = arith.constant dense<0.000000e+00> : vector<8x8x8xf32>
    %22 = tpu.matmul %21, %11, %cst_8 {dimension_numbers = #tpu.dot_dimension_numbers<[2], [1], [1], [2], [0, 0, 0, 1, 1, 2], [0], [0]>} : vector<8x8x8xf32>, vector<8x8x8xf32>, vector<8x8x8xf32> -> vector<8x8x8xf32>
    "tpu.trace_stop"() : () -> ()
    %23 = vector.shape_cast %22 : vector<8x8x8xf32> to vector<2x4x8x8xf32>
    %24 = tpu.transpose %23, [0, 2, 1, 3] : vector<2x4x8x8xf32> -> vector<2x8x4x8xf32>
    %25 = vector.shape_cast %24 : vector<2x8x4x8xf32> to vector<16x32xf32>
    %c0_9 = arith.constant 0 : index
    %c0_10 = arith.constant 0 : index
    %26 = vector.load %arg3[%c0_9, %c0_10] : memref<32x32xf32, #tpu.memory_space<vmem>>, vector<32x32xf32>
    %cst_11 = arith.constant dense<0.000000e+00> : vector<16x32xf32>
    %27 = tpu.matmul %25, %26, %cst_11 {dimension_numbers = #tpu.dot_dimension_numbers<[1], [0], [0], [1], [0, 0, 1, 1], [], []>} : vector<16x32xf32>, vector<32x32xf32>, vector<16x32xf32> -> vector<16x32xf32>
    %c0_12 = arith.constant 0 : index
    %c0_13 = arith.constant 0 : index
    %28 = vector.load %arg4[%c0_12, %c0_13] : memref<1x32xf32, #tpu.memory_space<vmem>>, vector<1x32xf32>
    %29 = vector.broadcast %28 : vector<1x32xf32> to vector<16x32xf32>
    %30 = arith.addf %27, %29 : vector<16x32xf32>
    %31 = arith.addf %30, %0 : vector<16x32xf32>
    %cst_14 = arith.constant dense<0.000000e+00> : vector<16xf32>
    %32 = vector.multi_reduction <add>, %31, %cst_14 [1] : vector<16x32xf32> to vector<16xf32>
    %33 = vector.shape_cast %32 : vector<16xf32> to vector<16x1xf32>
    %cst_15 = arith.constant 3.200000e+01 : f32
    %34 = vector.broadcast %cst_15 : f32 to vector<16x1xf32>
    %35 = arith.divf %33, %34 : vector<16x1xf32>
    %36 = vector.broadcast %35 : vector<16x1xf32> to vector<16x32xf32>
    %37 = arith.subf %31, %36 : vector<16x32xf32>
    %38 = arith.mulf %37, %37 : vector<16x32xf32>
    %cst_16 = arith.constant dense<0.000000e+00> : vector<16xf32>
    %39 = vector.multi_reduction <add>, %38, %cst_16 [1] : vector<16x32xf32> to vector<16xf32>
    %40 = vector.shape_cast %39 : vector<16xf32> to vector<16x1xf32>
    %cst_17 = arith.constant 3.200000e+01 : f32
    %41 = vector.broadcast %cst_17 : f32 to vector<16x1xf32>
    %42 = arith.divf %40, %41 : vector<16x1xf32>
    %cst_18 = arith.constant 9.99999974E-6 : f32
    %43 = vector.broadcast %cst_18 : f32 to vector<16x1xf32>
    %44 = arith.addf %42, %43 : vector<16x1xf32>
    %45 = math.rsqrt %44 : vector<16x1xf32>
    %46 = vector.broadcast %45 : vector<16x1xf32> to vector<16x32xf32>
    %47 = arith.mulf %37, %46 : vector<16x32xf32>
    %c0_19 = arith.constant 0 : index
    %c0_20 = arith.constant 0 : index
    %48 = vector.load %arg5[%c0_19, %c0_20] : memref<1x32xf32, #tpu.memory_space<vmem>>, vector<1x32xf32>
    %49 = vector.broadcast %48 : vector<1x32xf32> to vector<16x32xf32>
    %50 = arith.mulf %47, %49 : vector<16x32xf32>
    %c0_21 = arith.constant 0 : index
    %c0_22 = arith.constant 0 : index
    %51 = vector.load %arg6[%c0_21, %c0_22] : memref<1x32xf32, #tpu.memory_space<vmem>>, vector<1x32xf32>
    %52 = vector.broadcast %51 : vector<1x32xf32> to vector<16x32xf32>
    %53 = arith.addf %50, %52 : vector<16x32xf32>
    %c0_23 = arith.constant 0 : index
    %c0_24 = arith.constant 0 : index
    %54 = vector.load %arg7[%c0_23, %c0_24] : memref<16x32xf32, #tpu.memory_space<vmem>>, vector<16x32xf32>
    tpu.vector_store %arg7[%c0_23, %c0_24], %53 {strides = array<i32>} : memref<16x32xf32, #tpu.memory_space<vmem>>, vector<16x32xf32>,
    return
  }
}

</mosaic_0001>

<llo_original>
// kernel: tpu_custom_call.1
$region0: #{tpu_custom_call.1}
  #allocation0 [shape = 'u32[]', space=smem, size = 0x4, offset = 0x4, fixed_abs, tag = 'smem constant byte address 0x4 - core index']
  #allocation1 [shape = 'u32[144,128]{1,0:T(1,128)}', space=vmem, size = 0x12000, scoped, tag = 'internal scratch']
  %s0 = inlined_call_operand.hbm [shape: f32[16,32], index: 0, kind: input, shape index: {}]
  %s1 = inlined_call_operand.hbm [shape: f32[32,96], index: 1, kind: input, shape index: {}]
  %s2 = inlined_call_operand.vmem [shape: f32[1,96], index: 2, kind: input, shape index: {}]
  %s3 = inlined_call_operand.hbm [shape: f32[32,32], index: 3, kind: input, shape index: {}]
  %s4 = inlined_call_operand.vmem [shape: f32[1,32], index: 4, kind: input, shape index: {}]
  %s5 = inlined_call_operand.vmem [shape: f32[1,32], index: 5, kind: input, shape index: {}]
  %s6 = inlined_call_operand.vmem [shape: f32[1,32], index: 6, kind: input, shape index: {}]
  %s7 = inlined_call_operand.hbm [shape: f32[16,32], index: 7, kind: output, shape index: {}]
  %s8 = sld [smem:[#allocation0]]
  $region50: #{tpu_custom_call.1} parent=0
    _
  %s10 = ssub.s32 1, %s8
  %s11 = scalar_select 0, %s10, %s8
  $region1: #{tpu_custom_call.1} parent=0
    #allocation2 [shape = 'u8[8192]{0}', space=vmem, size = 0x2000, scoped, tag = 'input window, operand 0, single buffered']
    #allocation3 [shape = 's32[1]{0}', space=sflag, size = 0x4, scoped, tag = 'scoped memory for tpu_custom_call.1']
    #allocation4 [shape = 's32[1]{0}', space=sflag, size = 0x4, scoped, tag = 'scoped memory for tpu_custom_call.1']
    #allocation5 [shape = 'u8[16384]{0}', space=vmem, size = 0x4000, scoped, tag = 'input window, operand 1, single buffered']
    #allocation6 [shape = 's32[1]{0}', space=sflag, size = 0x4, scoped, tag = 'scoped memory for tpu_custom_call.1']
    #allocation7 [shape = 'u8[16384]{0}', space=vmem, size = 0x4000, scoped, tag = 'input window, operand 3, single buffered']
    #allocation8 [shape = 'u8[8192]{0}', space=vmem, size = 0x2000, scoped, tag = 'output window, operand 0, single buffered']
    %12 = vsyncpa [#allocation3], 0
    %13 = vsyncpa [#allocation6], 0
    %14 = vsyncpa [#allocation4], 0
    // Predicated region
    $region2: #{tpu_custom_call.1} parent=1 // pred_check
      _
    $region3: #{tpu_custom_call.1} parent=1 // pred_check_branch
      %16 = sbr.rel (0) target = $region5
    $region4: #{tpu_custom_call.1} parent=1 // pred_region
      %s18 = ssub.s32 256, 256
      %19 = vsyncadd [#allocation3], %s18
      %s20 = sshll.u32 [#allocation2], 4
      %s21 = int_to_ptr.vmem [resolvable:$true] %s20
      %26 = dma.hbm_to_vmem [thread:$0]  %s0, 256, %s21, [#allocation3], 128, 128, 8
    $region5: #{tpu_custom_call.1} parent=1 // pred_fallthru
      _
    // Predicated region
    $region6: #{tpu_custom_call.1} parent=1 // pred_check
      _
    $region7: #{tpu_custom_call.1} parent=1 // pred_check_branch
      %28 = sbr.rel (0) target = $region9
    $region8: #{tpu_custom_call.1} parent=1 // pred_region
      %s30 = ssub.s32 512, 512
      %31 = vsyncadd [#allocation6], %s30
      %s32 = sshll.u32 [#allocation5], 4
      %s33 = int_to_ptr.vmem [resolvable:$true] %s32
      %38 = dma.hbm_to_vmem [thread:$0]  %s1, 512, %s33, [#allocation6], 128, 128, 8
    $region9: #{tpu_custom_call.1} parent=1 // pred_fallthru
      _
    // Predicated region
    $region10: #{tpu_custom_call.1} parent=1 // pred_check
      _
    $region11: #{tpu_custom_call.1} parent=1 // pred_check_branch
      %40 = sbr.rel (0) target = $region13
    $region12: #{tpu_custom_call.1} parent=1 // pred_region
      _
    $region13: #{tpu_custom_call.1} parent=1 // pred_fallthru
      _
    // Predicated region
    $region14: #{tpu_custom_call.1} parent=1 // pred_check
      _
    $region15: #{tpu_custom_call.1} parent=1 // pred_check_branch
      %42 = sbr.rel (0) target = $region17
    $region16: #{tpu_custom_call.1} parent=1 // pred_region
      %s44 = ssub.s32 512, 512
      %45 = vsyncadd [#allocation6], %s44
      %s46 = sshll.u32 [#allocation7], 4
      %s47 = int_to_ptr.vmem [resolvable:$true] %s46
      %52 = dma.hbm_to_vmem [thread:$0]  %s3, 512, %s47, [#allocation6], 128, 128, 8
    $region17: #{tpu_custom_call.1} parent=1 // pred_fallthru
      _
    // Predicated region
    $region18: #{tpu_custom_call.1} parent=1 // pred_check
      _
    $region19: #{tpu_custom_call.1} parent=1 // pred_check_branch
      %54 = sbr.rel (0) target = $region21
    $region20: #{tpu_custom_call.1} parent=1 // pred_region
      _
    $region21: #{tpu_custom_call.1} parent=1 // pred_fallthru
      _
    // Predicated region
    $region22: #{tpu_custom_call.1} parent=1 // pred_check
      _
    $region23: #{tpu_custom_call.1} parent=1 // pred_check_branch
      %56 = sbr.rel (0) target = $region25
    $region24: #{tpu_custom_call.1} parent=1 // pred_region
      _
    $region25: #{tpu_custom_call.1} parent=1 // pred_fallthru
      _
    // Predicated region
    $region26: #{tpu_custom_call.1} parent=1 // pred_check
      _
    $region27: #{tpu_custom_call.1} parent=1 // pred_check_branch
      %58 = sbr.rel (0) target = $region29
    $region28: #{tpu_custom_call.1} parent=1 // pred_region
      _
    $region29: #{tpu_custom_call.1} parent=1 // pred_fallthru
      _
    // Predicated region
    $region30: #{tpu_custom_call.1} parent=1 // pred_check
      _
    $region31: #{tpu_custom_call.1} parent=1 // pred_check_branch
      %60 = sbr.rel (0) target = $region33
    $region32: #{tpu_custom_call.1} parent=1 // pred_region
      %61 = dma.done [#allocation3], 256
    $region33: #{tpu_custom_call.1} parent=1 // pred_fallthru
      _
    // Predicated region
    $region34: #{tpu_custom_call.1} parent=1 // pred_check
      _
    $region35: #{tpu_custom_call.1} parent=1 // pred_check_branch
      %63 = sbr.rel (0) target = $region37
    $region36: #{tpu_custom_call.1} parent=1 // pred_region
      %64 = dma.done [#allocation6], 512
    $region37: #{tpu_custom_call.1} parent=1 // pred_fallthru
      _
    // Predicated region
    $region38: #{tpu_custom_call.1} parent=1 // pred_check
      _
    $region39: #{tpu_custom_call.1} parent=1 // pred_check_branch
      %66 = sbr.rel (0) target = $region41
    $region40: #{tpu_custom_call.1} parent=1 // pred_region
      %67 = dma.done [#allocation6], 512
    $region41: #{tpu_custom_call.1} parent=1 // pred_fallthru
      _
    %v68 = vld [vmem:[#allocation2] sm:$0xff]
    %v69 = vld [vmem:[#allocation2 + $0x8] sm:$0xff]
    %v70 = vld [vmem:[#allocation5] sm:$0xff]
    %v71 = vld [vmem:[#allocation5 + $0x8] sm:$0xff]
    %v72 = vld [vmem:[#allocation5 + $0x10] sm:$0xff]
    %v73 = vld [vmem:[#allocation5 + $0x18] sm:$0xff]
    %v74 = vld [vmem:[%s2] sm:$0x1]
    %v76 = vlaneseq
    %v77 = vshrl.u32 %v76, 7
    %v78 = vsub.s32 0, %v77
    %v79 = vrot.slane %v74, %v78
    %vm81 = vcmask 261120
    %v83 = vsel %vm81, %v68, 0
    %v86 = vsel %vm81, %v69, 0
    %88 = vmatprep.subr.mxu0 0.0
    %89 = vmatpush1.msra.mxu0 %v70
    %90 = vmatprep.subr.mxu0 0.0
    %91 = vmatpush1.msra.mxu0 %v71
    %92 = vmatprep.subr.mxu0 0.0
    %93 = vmatpush1.msra.mxu0 %v72
    %94 = vmatprep.subr.mxu0 0.0
    %95 = vmatpush1.msra.mxu0 %v73
    %96 = vmatprep.subr.mxu0 0.0
    %97 = vmatpush1.msra.mxu0 0.0
    %98 = vmatprep.subr.mxu0 0.0
    %99 = vmatpush1.msra.mxu0 0.0
    %100 = vmatprep.subr.mxu0 0.0
    %101 = vmatpush1.msra.mxu0 0.0
    %102 = vmatprep.subr.mxu0 0.0
    %103 = vmatpush1.msra.mxu0 0.0
    %104 = vmatprep.subr.mxu0 0.0
    %105 = vmatpush1.msra.mxu0 0.0
    %106 = vmatprep.subr.mxu0 0.0
    %107 = vmatpush1.msra.mxu0 0.0
    %108 = vmatprep.subr.mxu0 0.0
    %109 = vmatpush1.msra.mxu0 0.0
    %110 = vmatprep.subr.mxu0 0.0
    %111 = vmatpush1.msra.mxu0 0.0
    %112 = vmatprep.subr.mxu0 0.0
    %113 = vmatpush1.msra.mxu0 0.0
    %114 = vmatprep.subr.mxu0 0.0
    %115 = vmatpush1.msra.mxu0 0.0
    %116 = vmatprep.subr.mxu0 0.0
    %117 = vmatpush1.msra.mxu0 0.0
    %118 = vmatprep.subr.mxu0 0.0
    %119 = vmatpush1.msra.mxu0 0.0
    %120 = vmatprep.subr.mxu0 0.0
    %121 = vmatpush1.msra.mxu0 0.0
    %122 = vmatprep.subr.mxu0 0.0
    %123 = vmatpush1.msra.mxu0 0.0
    %124 = vmatprep.subr.mxu0 0.0
    %125 = vmatpush1.msra.mxu0 0.0
    %126 = vmatprep.subr.mxu0 0.0
    %127 = vmatpush1.msra.mxu0 0.0
    %128 = vmatprep.subr.mxu0 0.0
    %129 = vmatpush1.msra.mxu0 0.0
    %130 = vmatprep.subr.mxu0 0.0
    %131 = vmatpush1.msra.mxu0 0.0
    %132 = vmatprep.subr.mxu0 0.0
    %133 = vmatpush1.msra.mxu0 0.0
    %134 = vmatprep.subr.mxu0 0.0
    %135 = vmatpush1.msra.mxu0 0.0
    %136 = vmatprep.subr.mxu0 0.0
    %137 = vmatpush1.msra.mxu0 0.0
    %138 = vmatprep.subr.mxu0 0.0
    %139 = vmatpush1.msra.mxu0 0.0
    %140 = vmatprep.subr.mxu0 0.0
    %141 = vmatpush1.msra.mxu0 0.0
    %142 = vmatprep.subr.mxu0 0.0
    %143 = vmatpush1.msra.mxu0 0.0
    %144 = vmatprep.subr.mxu0 0.0
    %145 = vmatpush1.msra.mxu0 0.0
    %146 = vmatprep.subr.mxu0 0.0
    %147 = vmatpush1.msra.mxu0 0.0
    %148 = vmatprep.subr.mxu0 0.0
    %149 = vmatpush1.msra.mxu0 0.0
    %150 = vmatprep.subr.mxu0 0.0
    %151 = vmatpush1.msra.mxu0 0.0
    %152 = vmatprep.mubr.f32.mxu0 0.0
    %153 = vmatmul.mubr.f32.gmra.mrb[0].mxu0 %v83
    %v154 = vpop.f32.mrb[0].mxu0
    %v155 = vadd.f32 %v79, %v154
    %v156 = vpop.f32.mrb[0].mxu0
    %157 = vmatprep.mubr.f32.mxu0 0.0
    %158 = vmatmul.mubr.f32.gmra.mrb[0].mxu0 %v86
    %v159 = vpop.f32.mrb[0].mxu0
    %v160 = vadd.f32 %v79, %v159
    %v161 = vpop.f32.mrb[0].mxu0
    %162 = vdwg.mxu0
    %165 = vrot.lane.b32.xlu0 %v155, 104
    %v166 = vpop.permute.xlu0 %165
    %167 = vrot.lane.b32.xlu0 %v160, 104
    %v168 = vpop.permute.xlu0 %167
    %171 = vrot.lane.b32.xlu0 %v155, 80
    %v172 = vpop.permute.xlu0 %171
    %173 = vrot.lane.b32.xlu0 %v160, 80
    %v174 = vpop.permute.xlu0 %173
    %177 = vrot.lane.b32.xlu0 %v155, 56
    %v178 = vpop.permute.xlu0 %177
    %179 = vrot.lane.b32.xlu0 %v160, 56
    %v180 = vpop.permute.xlu0 %179
    %v183 = vcombine.low %v155, %v172
    %v184 = vcombine.high %v155, %v172
    %v186 = vunpack.c.l.s4 1983009808
    %v187 = vunpack.c.0.s8 %v186
    %v188 = vlaneseq
    %v189 = vshrl.u32 %v188, 7
    %v190 = vsub.s32 %v187, %v189
    %v191 = vrot.slane %v183, %v190
    %v193 = vunpack.c.l.s4 1983009808
    %v194 = vunpack.c.0.s8 %v193
    %v195 = vlaneseq
    %v196 = vshrl.u32 %v195, 7
    %v197 = vsub.s32 %v194, %v196
    %v198 = vrot.slane %v184, %v197
    %v199 = vcombine.low %v166, %v178
    %v200 = vcombine.high %v166, %v178
    %v202 = vunpack.c.l.s4 1983009808
    %v203 = vunpack.c.0.s8 %v202
    %v204 = vlaneseq
    %v205 = vshrl.u32 %v204, 7
    %v206 = vsub.s32 %v203, %v205
    %v207 = vrot.slane %v199, %v206
    %v209 = vunpack.c.l.s4 1983009808
    %v210 = vunpack.c.0.s8 %v209
    %v211 = vlaneseq
    %v212 = vshrl.u32 %v211, 7
    %v213 = vsub.s32 %v210, %v212
    %v214 = vrot.slane %v200, %v213
    %v215 = vcombine.low %v191, %v207
    %v216 = vcombine.high %v191, %v207
    %v218 = vunpack.c.l.s4 1934713408
    %v219 = vunpack.c.0.s8 %v218
    %v220 = vlaneseq
    %v221 = vshrl.u32 %v220, 7
    %v222 = vsub.s32 %v219, %v221
    %v223 = vrot.slane %v215, %v222
    %v225 = vunpack.c.l.s4 1934713408
    %v226 = vunpack.c.0.s8 %v225
    %v227 = vlaneseq
    %v228 = vshrl.u32 %v227, 7
    %v229 = vsub.s32 %v226, %v228
    %v230 = vrot.slane %v216, %v229
    %v231 = vcombine.low %v198, %v214
    %v232 = vcombine.high %v198, %v214
    %v234 = vunpack.c.l.s4 1934713408
    %v235 = vunpack.c.0.s8 %v234
    %v236 = vlaneseq
    %v237 = vshrl.u32 %v236, 7
    %v238 = vsub.s32 %v235, %v237
    %v239 = vrot.slane %v231, %v238
    %v241 = vunpack.c.l.s4 1934713408
    %v242 = vunpack.c.0.s8 %v241
    %v243 = vlaneseq
    %v244 = vshrl.u32 %v243, 7
    %v245 = vsub.s32 %v242, %v244
    %v246 = vrot.slane %v232, %v245
    %v247 = vcombine.high %v223, 0.0
    %v248 = vcombine.high %v230, 0.0
    %v249 = vcombine.high %v239, 0.0
    %v250 = vcombine.high %v246, 0.0
    %v251 = vcombine.low %v160, %v174
    %v252 = vcombine.high %v160, %v174
    %v254 = vunpack.c.l.s4 1983009808
    %v255 = vunpack.c.0.s8 %v254
    %v256 = vlaneseq
    %v257 = vshrl.u32 %v256, 7
    %v258 = vsub.s32 %v255, %v257
    %v259 = vrot.slane %v251, %v258
    %v261 = vunpack.c.l.s4 1983009808
    %v262 = vunpack.c.0.s8 %v261
    %v263 = vlaneseq
    %v264 = vshrl.u32 %v263, 7
    %v265 = vsub.s32 %v262, %v264
    %v266 = vrot.slane %v252, %v265
    %v267 = vcombine.low %v168, %v180
    %v268 = vcombine.high %v168, %v180
    %v270 = vunpack.c.l.s4 1983009808
    %v271 = vunpack.c.0.s8 %v270
    %v272 = vlaneseq
    %v273 = vshrl.u32 %v272, 7
    %v274 = vsub.s32 %v271, %v273
    %v275 = vrot.slane %v267, %v274
    %v277 = vunpack.c.l.s4 1983009808
    %v278 = vunpack.c.0.s8 %v277
    %v279 = vlaneseq
    %v280 = vshrl.u32 %v279, 7
    %v281 = vsub.s32 %v278, %v280
    %v282 = vrot.slane %v268, %v281
    %v283 = vcombine.low %v259, %v275
    %v284 = vcombine.high %v259, %v275
    %v286 = vunpack.c.l.s4 1934713408
    %v287 = vunpack.c.0.s8 %v286
    %v288 = vlaneseq
    %v289 = vshrl.u32 %v288, 7
    %v290 = vsub.s32 %v287, %v289
    %v291 = vrot.slane %v283, %v290
    %v293 = vunpack.c.l.s4 1934713408
    %v294 = vunpack.c.0.s8 %v293
    %v295 = vlaneseq
    %v296 = vshrl.u32 %v295, 7
    %v297 = vsub.s32 %v294, %v296
    %v298 = vrot.slane %v284, %v297
    %v299 = vcombine.low %v266, %v282
    %v300 = vcombine.high %v266, %v282
    %v302 = vunpack.c.l.s4 1934713408
    %v303 = vunpack.c.0.s8 %v302
    %v304 = vlaneseq
    %v305 = vshrl.u32 %v304, 7
    %v306 = vsub.s32 %v303, %v305
    %v307 = vrot.slane %v299, %v306
    %v309 = vunpack.c.l.s4 1934713408
    %v310 = vunpack.c.0.s8 %v309
    %v311 = vlaneseq
    %v312 = vshrl.u32 %v311, 7
    %v313 = vsub.s32 %v310, %v312
    %v314 = vrot.slane %v300, %v313
    %v315 = vcombine.high %v291, 0.0
    %v316 = vcombine.high %v298, 0.0
    %v317 = vcombine.high %v307, 0.0
    %v318 = vcombine.high %v314, 0.0
    %v319 = vcombine.low %v223, %v230
    %v321 = vunpack.c.l.s4 1983009808
    %v322 = vunpack.c.0.s8 %v321
    %v323 = vlaneseq
    %v324 = vshrl.u32 %v323, 7
    %v325 = vsub.s32 %v322, %v324
    %v326 = vrot.slane %v319, %v325
    %v327 = vcombine.low %v247, %v248
    %v329 = vunpack.c.l.s4 1983009808
    %v330 = vunpack.c.0.s8 %v329
    %v331 = vlaneseq
    %v332 = vshrl.u32 %v331, 7
    %v333 = vsub.s32 %v330, %v332
    %v334 = vrot.slane %v327, %v333
    %v335 = vcombine.low %v239, %v246
    %v337 = vunpack.c.l.s4 1983009808
    %v338 = vunpack.c.0.s8 %v337
    %v339 = vlaneseq
    %v340 = vshrl.u32 %v339, 7
    %v341 = vsub.s32 %v338, %v340
    %v342 = vrot.slane %v335, %v341
    %v343 = vcombine.low %v249, %v250
    %v345 = vunpack.c.l.s4 1983009808
    %v346 = vunpack.c.0.s8 %v345
    %v347 = vlaneseq
    %v348 = vshrl.u32 %v347, 7
    %v349 = vsub.s32 %v346, %v348
    %v350 = vrot.slane %v343, %v349
    %v351 = vcombine.low %v326, %v334
    %v352 = vcombine.high %v326, %v334
    %v354 = vunpack.c.l.s4 1934713408
    %v355 = vunpack.c.0.s8 %v354
    %v356 = vlaneseq
    %v357 = vshrl.u32 %v356, 7
    %v358 = vsub.s32 %v355, %v357
    %v359 = vrot.slane %v351, %v358
    %v361 = vunpack.c.l.s4 1934713408
    %v362 = vunpack.c.0.s8 %v361
    %v363 = vlaneseq
    %v364 = vshrl.u32 %v363, 7
    %v365 = vsub.s32 %v362, %v364
    %v366 = vrot.slane %v352, %v365
    %v367 = vcombine.low %v342, %v350
    %v368 = vcombine.high %v342, %v350
    %v370 = vunpack.c.l.s4 1934713408
    %v371 = vunpack.c.0.s8 %v370
    %v372 = vlaneseq
    %v373 = vshrl.u32 %v372, 7
    %v374 = vsub.s32 %v371, %v373
    %v375 = vrot.slane %v367, %v374
    %v377 = vunpack.c.l.s4 1934713408
    %v378 = vunpack.c.0.s8 %v377
    %v379 = vlaneseq
    %v380 = vshrl.u32 %v379, 7
    %v381 = vsub.s32 %v378, %v380
    %v382 = vrot.slane %v368, %v381
    %v383 = vcombine.low %v359, %v375
    %v384 = vcombine.high %v359, %v375
    %v385 = vcombine.low %v366, %v382
    %v386 = vcombine.high %v366, %v382
    %v387 = vcombine.low %v291, %v298
    %v389 = vunpack.c.l.s4 1983009808
    %v390 = vunpack.c.0.s8 %v389
    %v391 = vlaneseq
    %v392 = vshrl.u32 %v391, 7
    %v393 = vsub.s32 %v390, %v392
    %v394 = vrot.slane %v387, %v393
    %v395 = vcombine.low %v315, %v316
    %v397 = vunpack.c.l.s4 1983009808
    %v398 = vunpack.c.0.s8 %v397
    %v399 = vlaneseq
    %v400 = vshrl.u32 %v399, 7
    %v401 = vsub.s32 %v398, %v400
    %v402 = vrot.slane %v395, %v401
    %v403 = vcombine.low %v307, %v314
    %v405 = vunpack.c.l.s4 1983009808
    %v406 = vunpack.c.0.s8 %v405
    %v407 = vlaneseq
    %v408 = vshrl.u32 %v407, 7
    %v409 = vsub.s32 %v406, %v408
    %v410 = vrot.slane %v403, %v409
    %v411 = vcombine.low %v317, %v318
    %v413 = vunpack.c.l.s4 1983009808
    %v414 = vunpack.c.0.s8 %v413
    %v415 = vlaneseq
    %v416 = vshrl.u32 %v415, 7
    %v417 = vsub.s32 %v414, %v416
    %v418 = vrot.slane %v411, %v417
    %v419 = vcombine.low %v394, %v402
    %v420 = vcombine.high %v394, %v402
    %v422 = vunpack.c.l.s4 1934713408
    %v423 = vunpack.c.0.s8 %v422
    %v424 = vlaneseq
    %v425 = vshrl.u32 %v424, 7
    %v426 = vsub.s32 %v423, %v425
    %v427 = vrot.slane %v419, %v426
    %v429 = vunpack.c.l.s4 1934713408
    %v430 = vunpack.c.0.s8 %v429
    %v431 = vlaneseq
    %v432 = vshrl.u32 %v431, 7
    %v433 = vsub.s32 %v430, %v432
    %v434 = vrot.slane %v420, %v433
    %v435 = vcombine.low %v410, %v418
    %v436 = vcombine.high %v410, %v418
    %v438 = vunpack.c.l.s4 1934713408
    %v439 = vunpack.c.0.s8 %v438
    %v440 = vlaneseq
    %v441 = vshrl.u32 %v440, 7
    %v442 = vsub.s32 %v439, %v441
    %v443 = vrot.slane %v435, %v442
    %v445 = vunpack.c.l.s4 1934713408
    %v446 = vunpack.c.0.s8 %v445
    %v447 = vlaneseq
    %v448 = vshrl.u32 %v447, 7
    %v449 = vsub.s32 %v446, %v448
    %v450 = vrot.slane %v436, %v449
    %v451 = vcombine.low %v427, %v443
    %v452 = vcombine.high %v427, %v443
    %v453 = vcombine.low %v434, %v450
    %v454 = vcombine.high %v434, %v450
    %456 = vrot.lane.b32.xlu0 %v383, 120
    %v457 = vpop.permute.xlu0 %456
    %vm458 = vcmask 64512
    %v459 = vsel %vm458, %v383, 0
    %v461 = vsel %vm458, %v457, 0
    %463 = vmatprep.subr.mxu0 0.0
    %464 = vmatpush1.xpose.msra.mxu0 %v461
    %465 = vmatprep.subr.mxu0 0.0
    %466 = vmatpush1.xpose.msra.mxu0 0.0
    %467 = vmatprep.subr.mxu0 0.0
    %468 = vmatpush1.xpose.msra.mxu0 0.0
    %469 = vmatprep.subr.mxu0 0.0
    %470 = vmatpush1.xpose.msra.mxu0 0.0
    %471 = vmatprep.subr.mxu0 0.0
    %472 = vmatpush1.xpose.msra.mxu0 0.0
    %473 = vmatprep.subr.mxu0 0.0
    %474 = vmatpush1.xpose.msra.mxu0 0.0
    %475 = vmatprep.subr.mxu0 0.0
    %476 = vmatpush1.xpose.msra.mxu0 0.0
    %477 = vmatprep.subr.mxu0 0.0
    %478 = vmatpush1.xpose.msra.mxu0 0.0
    %479 = vmatprep.subr.mxu0 0.0
    %480 = vmatpush1.xpose.msra.mxu0 0.0
    %481 = vmatprep.subr.mxu0 0.0
    %482 = vmatpush1.xpose.msra.mxu0 0.0
    %483 = vmatprep.subr.mxu0 0.0
    %484 = vmatpush1.xpose.msra.mxu0 0.0
    %485 = vmatprep.subr.mxu0 0.0
    %486 = vmatpush1.xpose.msra.mxu0 0.0
    %487 = vmatprep.subr.mxu0 0.0
    %488 = vmatpush1.xpose.msra.mxu0 0.0
    %489 = vmatprep.subr.mxu0 0.0
    %490 = vmatpush1.xpose.msra.mxu0 0.0
    %491 = vmatprep.subr.mxu0 0.0
    %492 = vmatpush1.xpose.msra.mxu0 0.0
    %493 = vmatprep.subr.mxu0 0.0
    %494 = vmatpush1.xpose.msra.mxu0 0.0
    %495 = vmatprep.subr.mxu0 0.0
    %496 = vmatpush1.xpose.msra.mxu0 0.0
    %497 = vmatprep.subr.mxu0 0.0
    %498 = vmatpush1.xpose.msra.mxu0 0.0
    %499 = vmatprep.subr.mxu0 0.0
    %500 = vmatpush1.xpose.msra.mxu0 0.0
    %501 = vmatprep.subr.mxu0 0.0
    %502 = vmatpush1.xpose.msra.mxu0 0.0
    %503 = vmatprep.subr.mxu0 0.0
    %504 = vmatpush1.xpose.msra.mxu0 0.0
    %505 = vmatprep.subr.mxu0 0.0
    %506 = vmatpush1.xpose.msra.mxu0 0.0
    %507 = vmatprep.subr.mxu0 0.0
    %508 = vmatpush1.xpose.msra.mxu0 0.0
    %509 = vmatprep.subr.mxu0 0.0
    %510 = vmatpush1.xpose.msra.mxu0 0.0
    %511 = vmatprep.subr.mxu0 0.0
    %512 = vmatpush1.xpose.msra.mxu0 0.0
    %513 = vmatprep.subr.mxu0 0.0
    %514 = vmatpush1.xpose.msra.mxu0 0.0
    %515 = vmatprep.subr.mxu0 0.0
    %516 = vmatpush1.xpose.msra.mxu0 0.0
    %517 = vmatprep.subr.mxu0 0.0
    %518 = vmatpush1.xpose.msra.mxu0 0.0
    %519 = vmatprep.subr.mxu0 0.0
    %520 = vmatpush1.xpose.msra.mxu0 0.0
    %521 = vmatprep.subr.mxu0 0.0
    %522 = vmatpush1.xpose.msra.mxu0 0.0
    %523 = vmatprep.subr.mxu0 0.0
    %524 = vmatpush1.xpose.msra.mxu0 0.0
    %525 = vmatprep.subr.mxu0 0.0
    %526 = vmatpush1.xpose.msra.mxu0 0.0
    %527 = vmatprep.mubr.f32.mxu0 0.0
    %528 = vmatmul.mubr.f32.gmra.mrb[0].mxu0 %v459
    %v529 = vpop.f32.mrb[0].mxu0
    %v530 = vadd.f32 0.0, %v529
    %v531 = vpop.f32.mrb[0].mxu0
    %532 = vdwg.mxu0
    %534 = vrot.lane.b32.xlu0 %v384, 120
    %v535 = vpop.permute.xlu0 %534
    %v536 = vsel %vm458, %v384, 0
    %v538 = vsel %vm458, %v535, 0
    %540 = vmatprep.subr.mxu0 0.0
    %541 = vmatpush1.xpose.msra.mxu0 %v538
    %542 = vmatprep.subr.mxu0 0.0
    %543 = vmatpush1.xpose.msra.mxu0 0.0
    %544 = vmatprep.subr.mxu0 0.0
    %545 = vmatpush1.xpose.msra.mxu0 0.0
    %546 = vmatprep.subr.mxu0 0.0
    %547 = vmatpush1.xpose.msra.mxu0 0.0
    %548 = vmatprep.subr.mxu0 0.0
    %549 = vmatpush1.xpose.msra.mxu0 0.0
    %550 = vmatprep.subr.mxu0 0.0
    %551 = vmatpush1.xpose.msra.mxu0 0.0
    %552 = vmatprep.subr.mxu0 0.0
    %553 = vmatpush1.xpose.msra.mxu0 0.0
    %554 = vmatprep.subr.mxu0 0.0
    %555 = vmatpush1.xpose.msra.mxu0 0.0
    %556 = vmatprep.subr.mxu0 0.0
    %557 = vmatpush1.xpose.msra.mxu0 0.0
    %558 = vmatprep.subr.mxu0 0.0
    %559 = vmatpush1.xpose.msra.mxu0 0.0
    %560 = vmatprep.subr.mxu0 0.0
    %561 = vmatpush1.xpose.msra.mxu0 0.0
    %562 = vmatprep.subr.mxu0 0.0
    %563 = vmatpush1.xpose.msra.mxu0 0.0
    %564 = vmatprep.subr.mxu0 0.0
    %565 = vmatpush1.xpose.msra.mxu0 0.0
    %566 = vmatprep.subr.mxu0 0.0
    %567 = vmatpush1.xpose.msra.mxu0 0.0
    %568 = vmatprep.subr.mxu0 0.0
    %569 = vmatpush1.xpose.msra.mxu0 0.0
    %570 = vmatprep.subr.mxu0 0.0
    %571 = vmatpush1.xpose.msra.mxu0 0.0
    %572 = vmatprep.subr.mxu0 0.0
    %573 = vmatpush1.xpose.msra.mxu0 0.0
    %574 = vmatprep.subr.mxu0 0.0
    %575 = vmatpush1.xpose.msra.mxu0 0.0
    %576 = vmatprep.subr.mxu0 0.0
    %577 = vmatpush1.xpose.msra.mxu0 0.0
    %578 = vmatprep.subr.mxu0 0.0
    %579 = vmatpush1.xpose.msra.mxu0 0.0
    %580 = vmatprep.subr.mxu0 0.0
    %581 = vmatpush1.xpose.msra.mxu0 0.0
    %582 = vmatprep.subr.mxu0 0.0
    %583 = vmatpush1.xpose.msra.mxu0 0.0
    %584 = vmatprep.subr.mxu0 0.0
    %585 = vmatpush1.xpose.msra.mxu0 0.0
    %586 = vmatprep.subr.mxu0 0.0
    %587 = vmatpush1.xpose.msra.mxu0 0.0
    %588 = vmatprep.subr.mxu0 0.0
    %589 = vmatpush1.xpose.msra.mxu0 0.0
    %590 = vmatprep.subr.mxu0 0.0
    %591 = vmatpush1.xpose.msra.mxu0 0.0
    %592 = vmatprep.subr.mxu0 0.0
    %593 = vmatpush1.xpose.msra.mxu0 0.0
    %594 = vmatprep.subr.mxu0 0.0
    %595 = vmatpush1.xpose.msra.mxu0 0.0
    %596 = vmatprep.subr.mxu0 0.0
    %597 = vmatpush1.xpose.msra.mxu0 0.0
    %598 = vmatprep.subr.mxu0 0.0
    %599 = vmatpush1.xpose.msra.mxu0 0.0
    %600 = vmatprep.subr.mxu0 0.0
    %601 = vmatpush1.xpose.msra.mxu0 0.0
    %602 = vmatprep.subr.mxu0 0.0
    %603 = vmatpush1.xpose.msra.mxu0 0.0
    %604 = vmatprep.mubr.f32.mxu0 0.0
    %605 = vmatmul.mubr.f32.gmra.mrb[0].mxu0 %v536
    %v606 = vpop.f32.mrb[0].mxu0
    %v607 = vadd.f32 0.0, %v606
    %v608 = vpop.f32.mrb[0].mxu0
    %609 = vdwg.mxu0
    %611 = vrot.lane.b32.xlu0 %v385, 120
    %v612 = vpop.permute.xlu0 %611
    %v613 = vsel %vm458, %v385, 0
    %v615 = vsel %vm458, %v612, 0
    %617 = vmatprep.subr.mxu0 0.0
    %618 = vmatpush1.xpose.msra.mxu0 %v615
    %619 = vmatprep.subr.mxu0 0.0
    %620 = vmatpush1.xpose.msra.mxu0 0.0
    %621 = vmatprep.subr.mxu0 0.0
    %622 = vmatpush1.xpose.msra.mxu0 0.0
    %623 = vmatprep.subr.mxu0 0.0
    %624 = vmatpush1.xpose.msra.mxu0 0.0
    %625 = vmatprep.subr.mxu0 0.0
    %626 = vmatpush1.xpose.msra.mxu0 0.0
    %627 = vmatprep.subr.mxu0 0.0
    %628 = vmatpush1.xpose.msra.mxu0 0.0
    %629 = vmatprep.subr.mxu0 0.0
    %630 = vmatpush1.xpose.msra.mxu0 0.0
    %631 = vmatprep.subr.mxu0 0.0
    %632 = vmatpush1.xpose.msra.mxu0 0.0
    %633 = vmatprep.subr.mxu0 0.0
    %634 = vmatpush1.xpose.msra.mxu0 0.0
    %635 = vmatprep.subr.mxu0 0.0
    %636 = vmatpush1.xpose.msra.mxu0 0.0
    %637 = vmatprep.subr.mxu0 0.0
    %638 = vmatpush1.xpose.msra.mxu0 0.0
    %639 = vmatprep.subr.mxu0 0.0
    %640 = vmatpush1.xpose.msra.mxu0 0.0
    %641 = vmatprep.subr.mxu0 0.0
    %642 = vmatpush1.xpose.msra.mxu0 0.0
    %643 = vmatprep.subr.mxu0 0.0
    %644 = vmatpush1.xpose.msra.mxu0 0.0
    %645 = vmatprep.subr.mxu0 0.0
    %646 = vmatpush1.xpose.msra.mxu0 0.0
    %647 = vmatprep.subr.mxu0 0.0
    %648 = vmatpush1.xpose.msra.mxu0 0.0
    %649 = vmatprep.subr.mxu0 0.0
    %650 = vmatpush1.xpose.msra.mxu0 0.0
    %651 = vmatprep.subr.mxu0 0.0
    %652 = vmatpush1.xpose.msra.mxu0 0.0
    %653 = vmatprep.subr.mxu0 0.0
    %654 = vmatpush1.xpose.msra.mxu0 0.0
    %655 = vmatprep.subr.mxu0 0.0
    %656 = vmatpush1.xpose.msra.mxu0 0.0
    %657 = vmatprep.subr.mxu0 0.0
    %658 = vmatpush1.xpose.msra.mxu0 0.0
    %659 = vmatprep.subr.mxu0 0.0
    %660 = vmatpush1.xpose.msra.mxu0 0.0
    %661 = vmatprep.subr.mxu0 0.0
    %662 = vmatpush1.xpose.msra.mxu0 0.0
    %663 = vmatprep.subr.mxu0 0.0
    %664 = vmatpush1.xpose.msra.mxu0 0.0
    %665 = vmatprep.subr.mxu0 0.0
    %666 = vmatpush1.xpose.msra.mxu0 0.0
    %667 = vmatprep.subr.mxu0 0.0
    %668 = vmatpush1.xpose.msra.mxu0 0.0
    %669 = vmatprep.subr.mxu0 0.0
    %670 = vmatpush1.xpose.msra.mxu0 0.0
    %671 = vmatprep.subr.mxu0 0.0
    %672 = vmatpush1.xpose.msra.mxu0 0.0
    %673 = vmatprep.subr.mxu0 0.0
    %674 = vmatpush1.xpose.msra.mxu0 0.0
    %675 = vmatprep.subr.mxu0 0.0
    %676 = vmatpush1.xpose.msra.mxu0 0.0
    %677 = vmatprep.subr.mxu0 0.0
    %678 = vmatpush1.xpose.msra.mxu0 0.0
    %679 = vmatprep.subr.mxu0 0.0
    %680 = vmatpush1.xpose.msra.mxu0 0.0
    %681 = vmatprep.mubr.f32.mxu0 0.0
    %682 = vmatmul.mubr.f32.gmra.mrb[0].mxu0 %v613
    %v683 = vpop.f32.mrb[0].mxu0
    %v684 = vadd.f32 0.0, %v683
    %v685 = vpop.f32.mrb[0].mxu0
    %686 = vdwg.mxu0
    %688 = vrot.lane.b32.xlu0 %v386, 120
    %v689 = vpop.permute.xlu0 %688
    %v690 = vsel %vm458, %v386, 0
    %v692 = vsel %vm458, %v689, 0
    %694 = vmatprep.subr.mxu0 0.0
    %695 = vmatpush1.xpose.msra.mxu0 %v692
    %696 = vmatprep.subr.mxu0 0.0
    %697 = vmatpush1.xpose.msra.mxu0 0.0
    %698 = vmatprep.subr.mxu0 0.0
    %699 = vmatpush1.xpose.msra.mxu0 0.0
    %700 = vmatprep.subr.mxu0 0.0
    %701 = vmatpush1.xpose.msra.mxu0 0.0
    %702 = vmatprep.subr.mxu0 0.0
    %703 = vmatpush1.xpose.msra.mxu0 0.0
    %704 = vmatprep.subr.mxu0 0.0
    %705 = vmatpush1.xpose.msra.mxu0 0.0
    %706 = vmatprep.subr.mxu0 0.0
    %707 = vmatpush1.xpose.msra.mxu0 0.0
    %708 = vmatprep.subr.mxu0 0.0
    %709 = vmatpush1.xpose.msra.mxu0 0.0
    %710 = vmatprep.subr.mxu0 0.0
    %711 = vmatpush1.xpose.msra.mxu0 0.0
    %712 = vmatprep.subr.mxu0 0.0
    %713 = vmatpush1.xpose.msra.mxu0 0.0
    %714 = vmatprep.subr.mxu0 0.0
    %715 = vmatpush1.xpose.msra.mxu0 0.0
    %716 = vmatprep.subr.mxu0 0.0
    %717 = vmatpush1.xpose.msra.mxu0 0.0
    %718 = vmatprep.subr.mxu0 0.0
    %719 = vmatpush1.xpose.msra.mxu0 0.0
    %720 = vmatprep.subr.mxu0 0.0
    %721 = vmatpush1.xpose.msra.mxu0 0.0
    %722 = vmatprep.subr.mxu0 0.0
    %723 = vmatpush1.xpose.msra.mxu0 0.0
    %724 = vmatprep.subr.mxu0 0.0
    %725 = vmatpush1.xpose.msra.mxu0 0.0
    %726 = vmatprep.subr.mxu0 0.0
    %727 = vmatpush1.xpose.msra.mxu0 0.0
    %728 = vmatprep.subr.mxu0 0.0
    %729 = vmatpush1.xpose.msra.mxu0 0.0
    %730 = vmatprep.subr.mxu0 0.0
    %731 = vmatpush1.xpose.msra.mxu0 0.0
    %732 = vmatprep.subr.mxu0 0.0
    %733 = vmatpush1.xpose.msra.mxu0 0.0
    %734 = vmatprep.subr.mxu0 0.0
    %735 = vmatpush1.xpose.msra.mxu0 0.0
    %736 = vmatprep.subr.mxu0 0.0
    %737 = vmatpush1.xpose.msra.mxu0 0.0
    %738 = vmatprep.subr.mxu0 0.0
    %739 = vmatpush1.xpose.msra.mxu0 0.0
    %740 = vmatprep.subr.mxu0 0.0
    %741 = vmatpush1.xpose.msra.mxu0 0.0
    %742 = vmatprep.subr.mxu0 0.0
    %743 = vmatpush1.xpose.msra.mxu0 0.0
    %744 = vmatprep.subr.mxu0 0.0
    %745 = vmatpush1.xpose.msra.mxu0 0.0
    %746 = vmatprep.subr.mxu0 0.0
    %747 = vmatpush1.xpose.msra.mxu0 0.0
    %748 = vmatprep.subr.mxu0 0.0
    %749 = vmatpush1.xpose.msra.mxu0 0.0
    %750 = vmatprep.subr.mxu0 0.0
    %751 = vmatpush1.xpose.msra.mxu0 0.0
    %752 = vmatprep.subr.mxu0 0.0
    %753 = vmatpush1.xpose.msra.mxu0 0.0
    %754 = vmatprep.subr.mxu0 0.0
    %755 = vmatpush1.xpose.msra.mxu0 0.0
    %756 = vmatprep.subr.mxu0 0.0
    %757 = vmatpush1.xpose.msra.mxu0 0.0
    %758 = vmatprep.mubr.f32.mxu0 0.0
    %759 = vmatmul.mubr.f32.gmra.mrb[0].mxu0 %v690
    %v760 = vpop.f32.mrb[0].mxu0
    %v761 = vadd.f32 0.0, %v760
    %v762 = vpop.f32.mrb[0].mxu0
    %763 = vdwg.mxu0
    %765 = vrot.lane.b32.xlu0 %v451, 120
    %v766 = vpop.permute.xlu0 %765
    %v767 = vsel %vm458, %v451, 0
    %v769 = vsel %vm458, %v766, 0
    %771 = vmatprep.subr.mxu0 0.0
    %772 = vmatpush1.xpose.msra.mxu0 %v769
    %773 = vmatprep.subr.mxu0 0.0
    %774 = vmatpush1.xpose.msra.mxu0 0.0
    %775 = vmatprep.subr.mxu0 0.0
    %776 = vmatpush1.xpose.msra.mxu0 0.0
    %777 = vmatprep.subr.mxu0 0.0
    %778 = vmatpush1.xpose.msra.mxu0 0.0
    %779 = vmatprep.subr.mxu0 0.0
    %780 = vmatpush1.xpose.msra.mxu0 0.0
    %781 = vmatprep.subr.mxu0 0.0
    %782 = vmatpush1.xpose.msra.mxu0 0.0
    %783 = vmatprep.subr.mxu0 0.0
    %784 = vmatpush1.xpose.msra.mxu0 0.0
    %785 = vmatprep.subr.mxu0 0.0
    %786 = vmatpush1.xpose.msra.mxu0 0.0
    %787 = vmatprep.subr.mxu0 0.0
    %788 = vmatpush1.xpose.msra.mxu0 0.0
    %789 = vmatprep.subr.mxu0 0.0
    %790 = vmatpush1.xpose.msra.mxu0 0.0
    %791 = vmatprep.subr.mxu0 0.0
    %792 = vmatpush1.xpose.msra.mxu0 0.0
    %793 = vmatprep.subr.mxu0 0.0
    %794 = vmatpush1.xpose.msra.mxu0 0.0
    %795 = vmatprep.subr.mxu0 0.0
    %796 = vmatpush1.xpose.msra.mxu0 0.0
    %797 = vmatprep.subr.mxu0 0.0
    %798 = vmatpush1.xpose.msra.mxu0 0.0
    %799 = vmatprep.subr.mxu0 0.0
    %800 = vmatpush1.xpose.msra.mxu0 0.0
    %801 = vmatprep.subr.mxu0 0.0
    %802 = vmatpush1.xpose.msra.mxu0 0.0
    %803 = vmatprep.subr.mxu0 0.0
    %804 = vmatpush1.xpose.msra.mxu0 0.0
    %805 = vmatprep.subr.mxu0 0.0
    %806 = vmatpush1.xpose.msra.mxu0 0.0
    %807 = vmatprep.subr.mxu0 0.0
    %808 = vmatpush1.xpose.msra.mxu0 0.0
    %809 = vmatprep.subr.mxu0 0.0
    %810 = vmatpush1.xpose.msra.mxu0 0.0
    %811 = vmatprep.subr.mxu0 0.0
    %812 = vmatpush1.xpose.msra.mxu0 0.0
    %813 = vmatprep.subr.mxu0 0.0
    %814 = vmatpush1.xpose.msra.mxu0 0.0
    %815 = vmatprep.subr.mxu0 0.0
    %816 = vmatpush1.xpose.msra.mxu0 0.0
    %817 = vmatprep.subr.mxu0 0.0
    %818 = vmatpush1.xpose.msra.mxu0 0.0
    %819 = vmatprep.subr.mxu0 0.0
    %820 = vmatpush1.xpose.msra.mxu0 0.0
    %821 = vmatprep.subr.mxu0 0.0
    %822 = vmatpush1.xpose.msra.mxu0 0.0
    %823 = vmatprep.subr.mxu0 0.0
    %824 = vmatpush1.xpose.msra.mxu0 0.0
    %825 = vmatprep.subr.mxu0 0.0
    %826 = vmatpush1.xpose.msra.mxu0 0.0
    %827 = vmatprep.subr.mxu0 0.0
    %828 = vmatpush1.xpose.msra.mxu0 0.0
    %829 = vmatprep.subr.mxu0 0.0
    %830 = vmatpush1.xpose.msra.mxu0 0.0
    %831 = vmatprep.subr.mxu0 0.0
    %832 = vmatpush1.xpose.msra.mxu0 0.0
    %833 = vmatprep.subr.mxu0 0.0
    %834 = vmatpush1.xpose.msra.mxu0 0.0
    %835 = vmatprep.mubr.f32.mxu0 0.0
    %836 = vmatmul.mubr.f32.gmra.mrb[0].mxu0 %v767
    %v837 = vpop.f32.mrb[0].mxu0
    %v838 = vadd.f32 0.0, %v837
    %v839 = vpop.f32.mrb[0].mxu0
    %840 = vdwg.mxu0
    %842 = vrot.lane.b32.xlu0 %v452, 120
    %v843 = vpop.permute.xlu0 %842
    %v844 = vsel %vm458, %v452, 0
    %v846 = vsel %vm458, %v843, 0
    %848 = vmatprep.subr.mxu0 0.0
    %849 = vmatpush1.xpose.msra.mxu0 %v846
    %850 = vmatprep.subr.mxu0 0.0
    %851 = vmatpush1.xpose.msra.mxu0 0.0
    %852 = vmatprep.subr.mxu0 0.0
    %853 = vmatpush1.xpose.msra.mxu0 0.0
    %854 = vmatprep.subr.mxu0 0.0
    %855 = vmatpush1.xpose.msra.mxu0 0.0
    %856 = vmatprep.subr.mxu0 0.0
    %857 = vmatpush1.xpose.msra.mxu0 0.0
    %858 = vmatprep.subr.mxu0 0.0
    %859 = vmatpush1.xpose.msra.mxu0 0.0
    %860 = vmatprep.subr.mxu0 0.0
    %861 = vmatpush1.xpose.msra.mxu0 0.0
    %862 = vmatprep.subr.mxu0 0.0
    %863 = vmatpush1.xpose.msra.mxu0 0.0
    %864 = vmatprep.subr.mxu0 0.0
    %865 = vmatpush1.xpose.msra.mxu0 0.0
    %866 = vmatprep.subr.mxu0 0.0
    %867 = vmatpush1.xpose.msra.mxu0 0.0
    %868 = vmatprep.subr.mxu0 0.0
    %869 = vmatpush1.xpose.msra.mxu0 0.0
    %870 = vmatprep.subr.mxu0 0.0
    %871 = vmatpush1.xpose.msra.mxu0 0.0
    %872 = vmatprep.subr.mxu0 0.0
    %873 = vmatpush1.xpose.msra.mxu0 0.0
    %874 = vmatprep.subr.mxu0 0.0
    %875 = vmatpush1.xpose.msra.mxu0 0.0
    %876 = vmatprep.subr.mxu0 0.0
    %877 = vmatpush1.xpose.msra.mxu0 0.0
    %878 = vmatprep.subr.mxu0 0.0
    %879 = vmatpush1.xpose.msra.mxu0 0.0
    %880 = vmatprep.subr.mxu0 0.0
    %881 = vmatpush1.xpose.msra.mxu0 0.0
    %882 = vmatprep.subr.mxu0 0.0
    %883 = vmatpush1.xpose.msra.mxu0 0.0
    %884 = vmatprep.subr.mxu0 0.0
    %885 = vmatpush1.xpose.msra.mxu0 0.0
    %886 = vmatprep.subr.mxu0 0.0
    %887 = vmatpush1.xpose.msra.mxu0 0.0
    %888 = vmatprep.subr.mxu0 0.0
    %889 = vmatpush1.xpose.msra.mxu0 0.0
    %890 = vmatprep.subr.mxu0 0.0
    %891 = vmatpush1.xpose.msra.mxu0 0.0
    %892 = vmatprep.subr.mxu0 0.0
    %893 = vmatpush1.xpose.msra.mxu0 0.0
    %894 = vmatprep.subr.mxu0 0.0
    %895 = vmatpush1.xpose.msra.mxu0 0.0
    %896 = vmatprep.subr.mxu0 0.0
    %897 = vmatpush1.xpose.msra.mxu0 0.0
    %898 = vmatprep.subr.mxu0 0.0
    %899 = vmatpush1.xpose.msra.mxu0 0.0
    %900 = vmatprep.subr.mxu0 0.0
    %901 = vmatpush1.xpose.msra.mxu0 0.0
    %902 = vmatprep.subr.mxu0 0.0
    %903 = vmatpush1.xpose.msra.mxu0 0.0
    %904 = vmatprep.subr.mxu0 0.0
    %905 = vmatpush1.xpose.msra.mxu0 0.0
    %906 = vmatprep.subr.mxu0 0.0
    %907 = vmatpush1.xpose.msra.mxu0 0.0
    %908 = vmatprep.subr.mxu0 0.0
    %909 = vmatpush1.xpose.msra.mxu0 0.0
    %910 = vmatprep.subr.mxu0 0.0
    %911 = vmatpush1.xpose.msra.mxu0 0.0
    %912 = vmatprep.mubr.f32.mxu0 0.0
    %913 = vmatmul.mubr.f32.gmra.mrb[0].mxu0 %v844
    %v914 = vpop.f32.mrb[0].mxu0
    %v915 = vadd.f32 0.0, %v914
    %v916 = vpop.f32.mrb[0].mxu0
    %917 = vdwg.mxu0
    %919 = vrot.lane.b32.xlu0 %v453, 120
    %v920 = vpop.permute.xlu0 %919
    %v921 = vsel %vm458, %v453, 0
    %v923 = vsel %vm458, %v920, 0
    %925 = vmatprep.subr.mxu0 0.0
    %926 = vmatpush1.xpose.msra.mxu0 %v923
    %927 = vmatprep.subr.mxu0 0.0
    %928 = vmatpush1.xpose.msra.mxu0 0.0
    %929 = vmatprep.subr.mxu0 0.0
    %930 = vmatpush1.xpose.msra.mxu0 0.0
    %931 = vmatprep.subr.mxu0 0.0
    %932 = vmatpush1.xpose.msra.mxu0 0.0
    %933 = vmatprep.subr.mxu0 0.0
    %934 = vmatpush1.xpose.msra.mxu0 0.0
    %935 = vmatprep.subr.mxu0 0.0
    %936 = vmatpush1.xpose.msra.mxu0 0.0
    %937 = vmatprep.subr.mxu0 0.0
    %938 = vmatpush1.xpose.msra.mxu0 0.0
    %939 = vmatprep.subr.mxu0 0.0
    %940 = vmatpush1.xpose.msra.mxu0 0.0
    %941 = vmatprep.subr.mxu0 0.0
    %942 = vmatpush1.xpose.msra.mxu0 0.0
    %943 = vmatprep.subr.mxu0 0.0
    %944 = vmatpush1.xpose.msra.mxu0 0.0
    %945 = vmatprep.subr.mxu0 0.0
    %946 = vmatpush1.xpose.msra.mxu0 0.0
    %947 = vmatprep.subr.mxu0 0.0
    %948 = vmatpush1.xpose.msra.mxu0 0.0
    %949 = vmatprep.subr.mxu0 0.0
    %950 = vmatpush1.xpose.msra.mxu0 0.0
    %951 = vmatprep.subr.mxu0 0.0
    %952 = vmatpush1.xpose.msra.mxu0 0.0
    %953 = vmatprep.subr.mxu0 0.0
    %954 = vmatpush1.xpose.msra.mxu0 0.0
    %955 = vmatprep.subr.mxu0 0.0
    %956 = vmatpush1.xpose.msra.mxu0 0.0
    %957 = vmatprep.subr.mxu0 0.0
    %958 = vmatpush1.xpose.msra.mxu0 0.0
    %959 = vmatprep.subr.mxu0 0.0
    %960 = vmatpush1.xpose.msra.mxu0 0.0
    %961 = vmatprep.subr.mxu0 0.0
    %962 = vmatpush1.xpose.msra.mxu0 0.0
    %963 = vmatprep.subr.mxu0 0.0
    %964 = vmatpush1.xpose.msra.mxu0 0.0
    %965 = vmatprep.subr.mxu0 0.0
    %966 = vmatpush1.xpose.msra.mxu0 0.0
    %967 = vmatprep.subr.mxu0 0.0
    %968 = vmatpush1.xpose.msra.mxu0 0.0
    %969 = vmatprep.subr.mxu0 0.0
    %970 = vmatpush1.xpose.msra.mxu0 0.0
    %971 = vmatprep.subr.mxu0 0.0
    %972 = vmatpush1.xpose.msra.mxu0 0.0
    %973 = vmatprep.subr.mxu0 0.0
    %974 = vmatpush1.xpose.msra.mxu0 0.0
    %975 = vmatprep.subr.mxu0 0.0
    %976 = vmatpush1.xpose.msra.mxu0 0.0
    %977 = vmatprep.subr.mxu0 0.0
    %978 = vmatpush1.xpose.msra.mxu0 0.0
    %979 = vmatprep.subr.mxu0 0.0
    %980 = vmatpush1.xpose.msra.mxu0 0.0
    %981 = vmatprep.subr.mxu0 0.0
    %982 = vmatpush1.xpose.msra.mxu0 0.0
    %983 = vmatprep.subr.mxu0 0.0
    %984 = vmatpush1.xpose.msra.mxu0 0.0
    %985 = vmatprep.subr.mxu0 0.0
    %986 = vmatpush1.xpose.msra.mxu0 0.0
    %987 = vmatprep.subr.mxu0 0.0
    %988 = vmatpush1.xpose.msra.mxu0 0.0
    %989 = vmatprep.mubr.f32.mxu0 0.0
    %990 = vmatmul.mubr.f32.gmra.mrb[0].mxu0 %v921
    %v991 = vpop.f32.mrb[0].mxu0
    %v992 = vadd.f32 0.0, %v991
    %v993 = vpop.f32.mrb[0].mxu0
    %994 = vdwg.mxu0
    %996 = vrot.lane.b32.xlu0 %v454, 120
    %v997 = vpop.permute.xlu0 %996
    %v998 = vsel %vm458, %v454, 0
    %v1000 = vsel %vm458, %v997, 0
    %1002 = vmatprep.subr.mxu0 0.0
    %1003 = vmatpush1.xpose.msra.mxu0 %v1000
    %1004 = vmatprep.subr.mxu0 0.0
    %1005 = vmatpush1.xpose.msra.mxu0 0.0
    %1006 = vmatprep.subr.mxu0 0.0
    %1007 = vmatpush1.xpose.msra.mxu0 0.0
    %1008 = vmatprep.subr.mxu0 0.0
    %1009 = vmatpush1.xpose.msra.mxu0 0.0
    %1010 = vmatprep.subr.mxu0 0.0
    %1011 = vmatpush1.xpose.msra.mxu0 0.0
    %1012 = vmatprep.subr.mxu0 0.0
    %1013 = vmatpush1.xpose.msra.mxu0 0.0
    %1014 = vmatprep.subr.mxu0 0.0
    %1015 = vmatpush1.xpose.msra.mxu0 0.0
    %1016 = vmatprep.subr.mxu0 0.0
    %1017 = vmatpush1.xpose.msra.mxu0 0.0
    %1018 = vmatprep.subr.mxu0 0.0
    %1019 = vmatpush1.xpose.msra.mxu0 0.0
    %1020 = vmatprep.subr.mxu0 0.0
    %1021 = vmatpush1.xpose.msra.mxu0 0.0
    %1022 = vmatprep.subr.mxu0 0.0
    %1023 = vmatpush1.xpose.msra.mxu0 0.0
    %1024 = vmatprep.subr.mxu0 0.0
    %1025 = vmatpush1.xpose.msra.mxu0 0.0
    %1026 = vmatprep.subr.mxu0 0.0
    %1027 = vmatpush1.xpose.msra.mxu0 0.0
    %1028 = vmatprep.subr.mxu0 0.0
    %1029 = vmatpush1.xpose.msra.mxu0 0.0
    %1030 = vmatprep.subr.mxu0 0.0
    %1031 = vmatpush1.xpose.msra.mxu0 0.0
    %1032 = vmatprep.subr.mxu0 0.0
    %1033 = vmatpush1.xpose.msra.mxu0 0.0
    %1034 = vmatprep.subr.mxu0 0.0
    %1035 = vmatpush1.xpose.msra.mxu0 0.0
    %1036 = vmatprep.subr.mxu0 0.0
    %1037 = vmatpush1.xpose.msra.mxu0 0.0
    %1038 = vmatprep.subr.mxu0 0.0
    %1039 = vmatpush1.xpose.msra.mxu0 0.0
    %1040 = vmatprep.subr.mxu0 0.0
    %1041 = vmatpush1.xpose.msra.mxu0 0.0
    %1042 = vmatprep.subr.mxu0 0.0
    %1043 = vmatpush1.xpose.msra.mxu0 0.0
    %1044 = vmatprep.subr.mxu0 0.0
    %1045 = vmatpush1.xpose.msra.mxu0 0.0
    %1046 = vmatprep.subr.mxu0 0.0
    %1047 = vmatpush1.xpose.msra.mxu0 0.0
    %1048 = vmatprep.subr.mxu0 0.0
    %1049 = vmatpush1.xpose.msra.mxu0 0.0
    %1050 = vmatprep.subr.mxu0 0.0
    %1051 = vmatpush1.xpose.msra.mxu0 0.0
    %1052 = vmatprep.subr.mxu0 0.0
    %1053 = vmatpush1.xpose.msra.mxu0 0.0
    %1054 = vmatprep.subr.mxu0 0.0
    %1055 = vmatpush1.xpose.msra.mxu0 0.0
    %1056 = vmatprep.subr.mxu0 0.0
    %1057 = vmatpush1.xpose.msra.mxu0 0.0
    %1058 = vmatprep.subr.mxu0 0.0
    %1059 = vmatpush1.xpose.msra.mxu0 0.0
    %1060 = vmatprep.subr.mxu0 0.0
    %1061 = vmatpush1.xpose.msra.mxu0 0.0
    %1062 = vmatprep.subr.mxu0 0.0
    %1063 = vmatpush1.xpose.msra.mxu0 0.0
    %1064 = vmatprep.subr.mxu0 0.0
    %1065 = vmatpush1.xpose.msra.mxu0 0.0
    %1066 = vmatprep.mubr.f32.mxu0 0.0
    %1067 = vmatmul.mubr.f32.gmra.mrb[0].mxu0 %v998
    %v1068 = vpop.f32.mrb[0].mxu0
    %v1069 = vadd.f32 0.0, %v1068
    %v1070 = vpop.f32.mrb[0].mxu0
    %1071 = vdwg.mxu0
    %v1072 = vsel %vm458, %v530, -inf
    %1073 = vmax.xlane.f32.xlu0 %v1072
    %v1074 = vpop.xlane.xlu0 %1073
    %v1075 = vsel %vm458, %v607, -inf
    %1076 = vmax.xlane.f32.xlu0 %v1075
    %v1077 = vpop.xlane.xlu0 %1076
    %v1078 = vsel %vm458, %v684, -inf
    %1079 = vmax.xlane.f32.xlu0 %v1078
    %v1080 = vpop.xlane.xlu0 %1079
    %v1081 = vsel %vm458, %v761, -inf
    %1082 = vmax.xlane.f32.xlu0 %v1081
    %v1083 = vpop.xlane.xlu0 %1082
    %v1084 = vsel %vm458, %v838, -inf
    %1085 = vmax.xlane.f32.xlu0 %v1084
    %v1086 = vpop.xlane.xlu0 %1085
    %v1087 = vsel %vm458, %v915, -inf
    %1088 = vmax.xlane.f32.xlu0 %v1087
    %v1089 = vpop.xlane.xlu0 %1088
    %v1090 = vsel %vm458, %v992, -inf
    %1091 = vmax.xlane.f32.xlu0 %v1090
    %v1092 = vpop.xlane.xlu0 %1091
    %v1093 = vsel %vm458, %v1069, -inf
    %1094 = vmax.xlane.f32.xlu0 %v1093
    %v1095 = vpop.xlane.xlu0 %1094
    %v1096 = vsub.f32 %v530, %v1074
    %v1097 = vsub.f32 %v607, %v1077
    %v1098 = vsub.f32 %v684, %v1080
    %v1099 = vsub.f32 %v761, %v1083
    %v1100 = vsub.f32 %v838, %v1086
    %v1101 = vsub.f32 %v915, %v1089
    %v1102 = vsub.f32 %v992, %v1092
    %v1103 = vsub.f32 %v1069, %v1095
    %v1104 = vmul.f32 %v1096, 1.442695
    %v1105 = vpow.pop %v1104
    %v1106 = vmul.f32 %v1097, 1.442695
    %v1107 = vpow.pop %v1106
    %v1108 = vmul.f32 %v1098, 1.442695
    %v1109 = vpow.pop %v1108
    %v1110 = vmul.f32 %v1099, 1.442695
    %v1111 = vpow.pop %v1110
    %v1112 = vmul.f32 %v1100, 1.442695
    %v1113 = vpow.pop %v1112
    %v1114 = vmul.f32 %v1101, 1.442695
    %v1115 = vpow.pop %v1114
    %v1116 = vmul.f32 %v1102, 1.442695
    %v1117 = vpow.pop %v1116
    %v1118 = vmul.f32 %v1103, 1.442695
    %v1119 = vpow.pop %v1118
    %v1120 = vsel %vm458, %v1105, 0.0
    %1121 = vadd.xlane.f32.xlu0 %v1120
    %v1122 = vpop.xlane.xlu0 %1121
    %v1123 = vsel %vm458, %v1107, 0.0
    %1124 = vadd.xlane.f32.xlu0 %v1123
    %v1125 = vpop.xlane.xlu0 %1124
    %v1126 = vsel %vm458, %v1109, 0.0
    %1127 = vadd.xlane.f32.xlu0 %v1126
    %v1128 = vpop.xlane.xlu0 %1127
    %v1129 = vsel %vm458, %v1111, 0.0
    %1130 = vadd.xlane.f32.xlu0 %v1129
    %v1131 = vpop.xlane.xlu0 %1130
    %v1132 = vsel %vm458, %v1113, 0.0
    %1133 = vadd.xlane.f32.xlu0 %v1132
    %v1134 = vpop.xlane.xlu0 %1133
    %v1135 = vsel %vm458, %v1115, 0.0
    %1136 = vadd.xlane.f32.xlu0 %v1135
    %v1137 = vpop.xlane.xlu0 %1136
    %v1138 = vsel %vm458, %v1117, 0.0
    %1139 = vadd.xlane.f32.xlu0 %v1138
    %v1140 = vpop.xlane.xlu0 %1139
    %v1141 = vsel %vm458, %v1119, 0.0
    %1142 = vadd.xlane.f32.xlu0 %v1141
    %v1143 = vpop.xlane.xlu0 %1142
    %v1144 = vrcp.pop %v1122
    %v1145 = vmul.f32 %v1105, %v1144
    %v1146 = vrcp.pop %v1125
    %v1147 = vmul.f32 %v1107, %v1146
    %v1148 = vrcp.pop %v1128
    %v1149 = vmul.f32 %v1109, %v1148
    %v1150 = vrcp.pop %v1131
    %v1151 = vmul.f32 %v1111, %v1150
    %v1152 = vrcp.pop %v1134
    %v1153 = vmul.f32 %v1113, %v1152
    %v1154 = vrcp.pop %v1137
    %v1155 = vmul.f32 %v1115, %v1154
    %v1156 = vrcp.pop %v1140
    %v1157 = vmul.f32 %v1117, %v1156
    %v1158 = vrcp.pop %v1143
    %v1159 = vmul.f32 %v1119, %v1158
    %1160 = vrot.lane.b32.xlu0 %v383, 112
    %v1161 = vpop.permute.xlu0 %1160
    %v1164 = vsel %vm458, %v1145, 0
    %1166 = vmatprep.subr.mxu0 0.0
    %1167 = vmatpush1.msra.mxu0 %v1161
    %1168 = vmatprep.subr.mxu0 0.0
    %1169 = vmatpush1.msra.mxu0 0.0
    %1170 = vmatprep.subr.mxu0 0.0
    %1171 = vmatpush1.msra.mxu0 0.0
    %1172 = vmatprep.subr.mxu0 0.0
    %1173 = vmatpush1.msra.mxu0 0.0
    %1174 = vmatprep.subr.mxu0 0.0
    %1175 = vmatpush1.msra.mxu0 0.0
    %1176 = vmatprep.subr.mxu0 0.0
    %1177 = vmatpush1.msra.mxu0 0.0
    %1178 = vmatprep.subr.mxu0 0.0
    %1179 = vmatpush1.msra.mxu0 0.0
    %1180 = vmatprep.subr.mxu0 0.0
    %1181 = vmatpush1.msra.mxu0 0.0
    %1182 = vmatprep.subr.mxu0 0.0
    %1183 = vmatpush1.msra.mxu0 0.0
    %1184 = vmatprep.subr.mxu0 0.0
    %1185 = vmatpush1.msra.mxu0 0.0
    %1186 = vmatprep.subr.mxu0 0.0
    %1187 = vmatpush1.msra.mxu0 0.0
    %1188 = vmatprep.subr.mxu0 0.0
    %1189 = vmatpush1.msra.mxu0 0.0
    %1190 = vmatprep.subr.mxu0 0.0
    %1191 = vmatpush1.msra.mxu0 0.0
    %1192 = vmatprep.subr.mxu0 0.0
    %1193 = vmatpush1.msra.mxu0 0.0
    %1194 = vmatprep.subr.mxu0 0.0
    %1195 = vmatpush1.msra.mxu0 0.0
    %1196 = vmatprep.subr.mxu0 0.0
    %1197 = vmatpush1.msra.mxu0 0.0
    %1198 = vmatprep.subr.mxu0 0.0
    %1199 = vmatpush1.msra.mxu0 0.0
    %1200 = vmatprep.subr.mxu0 0.0
    %1201 = vmatpush1.msra.mxu0 0.0
    %1202 = vmatprep.subr.mxu0 0.0
    %1203 = vmatpush1.msra.mxu0 0.0
    %1204 = vmatprep.subr.mxu0 0.0
    %1205 = vmatpush1.msra.mxu0 0.0
    %1206 = vmatprep.subr.mxu0 0.0
    %1207 = vmatpush1.msra.mxu0 0.0
    %1208 = vmatprep.subr.mxu0 0.0
    %1209 = vmatpush1.msra.mxu0 0.0
    %1210 = vmatprep.subr.mxu0 0.0
    %1211 = vmatpush1.msra.mxu0 0.0
    %1212 = vmatprep.subr.mxu0 0.0
    %1213 = vmatpush1.msra.mxu0 0.0
    %1214 = vmatprep.subr.mxu0 0.0
    %1215 = vmatpush1.msra.mxu0 0.0
    %1216 = vmatprep.subr.mxu0 0.0
    %1217 = vmatpush1.msra.mxu0 0.0
    %1218 = vmatprep.subr.mxu0 0.0
    %1219 = vmatpush1.msra.mxu0 0.0
    %1220 = vmatprep.subr.mxu0 0.0
    %1221 = vmatpush1.msra.mxu0 0.0
    %1222 = vmatprep.subr.mxu0 0.0
    %1223 = vmatpush1.msra.mxu0 0.0
    %1224 = vmatprep.subr.mxu0 0.0
    %1225 = vmatpush1.msra.mxu0 0.0
    %1226 = vmatprep.subr.mxu0 0.0
    %1227 = vmatpush1.msra.mxu0 0.0
    %1228 = vmatprep.subr.mxu0 0.0
    %1229 = vmatpush1.msra.mxu0 0.0
    %1230 = vmatprep.mubr.f32.mxu0 0.0
    %1231 = vmatmul.mubr.f32.gmra.mrb[0].mxu0 %v1164
    %v1232 = vpop.f32.mrb[0].mxu0
    %v1233 = vadd.f32 0.0, %v1232
    %v1234 = vpop.f32.mrb[0].mxu0
    %1235 = vdwg.mxu0
    %1236 = vrot.lane.b32.xlu0 %v384, 112
    %v1237 = vpop.permute.xlu0 %1236
    %v1240 = vsel %vm458, %v1147, 0
    %1242 = vmatprep.subr.mxu0 0.0
    %1243 = vmatpush1.msra.mxu0 %v1237
    %1244 = vmatprep.subr.mxu0 0.0
    %1245 = vmatpush1.msra.mxu0 0.0
    %1246 = vmatprep.subr.mxu0 0.0
    %1247 = vmatpush1.msra.mxu0 0.0
    %1248 = vmatprep.subr.mxu0 0.0
    %1249 = vmatpush1.msra.mxu0 0.0
    %1250 = vmatprep.subr.mxu0 0.0
    %1251 = vmatpush1.msra.mxu0 0.0
    %1252 = vmatprep.subr.mxu0 0.0
    %1253 = vmatpush1.msra.mxu0 0.0
    %1254 = vmatprep.subr.mxu0 0.0
    %1255 = vmatpush1.msra.mxu0 0.0
    %1256 = vmatprep.subr.mxu0 0.0
    %1257 = vmatpush1.msra.mxu0 0.0
    %1258 = vmatprep.subr.mxu0 0.0
    %1259 = vmatpush1.msra.mxu0 0.0
    %1260 = vmatprep.subr.mxu0 0.0
    %1261 = vmatpush1.msra.mxu0 0.0
    %1262 = vmatprep.subr.mxu0 0.0
    %1263 = vmatpush1.msra.mxu0 0.0
    %1264 = vmatprep.subr.mxu0 0.0
    %1265 = vmatpush1.msra.mxu0 0.0
    %1266 = vmatprep.subr.mxu0 0.0
    %1267 = vmatpush1.msra.mxu0 0.0
    %1268 = vmatprep.subr.mxu0 0.0
    %1269 = vmatpush1.msra.mxu0 0.0
    %1270 = vmatprep.subr.mxu0 0.0
    %1271 = vmatpush1.msra.mxu0 0.0
    %1272 = vmatprep.subr.mxu0 0.0
    %1273 = vmatpush1.msra.mxu0 0.0
    %1274 = vmatprep.subr.mxu0 0.0
    %1275 = vmatpush1.msra.mxu0 0.0
    %1276 = vmatprep.subr.mxu0 0.0
    %1277 = vmatpush1.msra.mxu0 0.0
    %1278 = vmatprep.subr.mxu0 0.0
    %1279 = vmatpush1.msra.mxu0 0.0
    %1280 = vmatprep.subr.mxu0 0.0
    %1281 = vmatpush1.msra.mxu0 0.0
    %1282 = vmatprep.subr.mxu0 0.0
    %1283 = vmatpush1.msra.mxu0 0.0
    %1284 = vmatprep.subr.mxu0 0.0
    %1285 = vmatpush1.msra.mxu0 0.0
    %1286 = vmatprep.subr.mxu0 0.0
    %1287 = vmatpush1.msra.mxu0 0.0
    %1288 = vmatprep.subr.mxu0 0.0
    %1289 = vmatpush1.msra.mxu0 0.0
    %1290 = vmatprep.subr.mxu0 0.0
    %1291 = vmatpush1.msra.mxu0 0.0
    %1292 = vmatprep.subr.mxu0 0.0
    %1293 = vmatpush1.msra.mxu0 0.0
    %1294 = vmatprep.subr.mxu0 0.0
    %1295 = vmatpush1.msra.mxu0 0.0
    %1296 = vmatprep.subr.mxu0 0.0
    %1297 = vmatpush1.msra.mxu0 0.0
    %1298 = vmatprep.subr.mxu0 0.0
    %1299 = vmatpush1.msra.mxu0 0.0
    %1300 = vmatprep.subr.mxu0 0.0
    %1301 = vmatpush1.msra.mxu0 0.0
    %1302 = vmatprep.subr.mxu0 0.0
    %1303 = vmatpush1.msra.mxu0 0.0
    %1304 = vmatprep.subr.mxu0 0.0
    %1305 = vmatpush1.msra.mxu0 0.0
    %1306 = vmatprep.mubr.f32.mxu0 0.0
    %1307 = vmatmul.mubr.f32.gmra.mrb[0].mxu0 %v1240
    %v1308 = vpop.f32.mrb[0].mxu0
    %v1309 = vadd.f32 0.0, %v1308
    %v1310 = vpop.f32.mrb[0].mxu0
    %1311 = vdwg.mxu0
    %1312 = vrot.lane.b32.xlu0 %v385, 112
    %v1313 = vpop.permute.xlu0 %1312
    %v1316 = vsel %vm458, %v1149, 0
    %1318 = vmatprep.subr.mxu0 0.0
    %1319 = vmatpush1.msra.mxu0 %v1313
    %1320 = vmatprep.subr.mxu0 0.0
    %1321 = vmatpush1.msra.mxu0 0.0
    %1322 = vmatprep.subr.mxu0 0.0
    %1323 = vmatpush1.msra.mxu0 0.0
    %1324 = vmatprep.subr.mxu0 0.0
    %1325 = vmatpush1.msra.mxu0 0.0
    %1326 = vmatprep.subr.mxu0 0.0
    %1327 = vmatpush1.msra.mxu0 0.0
    %1328 = vmatprep.subr.mxu0 0.0
    %1329 = vmatpush1.msra.mxu0 0.0
    %1330 = vmatprep.subr.mxu0 0.0
    %1331 = vmatpush1.msra.mxu0 0.0
    %1332 = vmatprep.subr.mxu0 0.0
    %1333 = vmatpush1.msra.mxu0 0.0
    %1334 = vmatprep.subr.mxu0 0.0
    %1335 = vmatpush1.msra.mxu0 0.0
    %1336 = vmatprep.subr.mxu0 0.0
    %1337 = vmatpush1.msra.mxu0 0.0
    %1338 = vmatprep.subr.mxu0 0.0
    %1339 = vmatpush1.msra.mxu0 0.0
    %1340 = vmatprep.subr.mxu0 0.0
    %1341 = vmatpush1.msra.mxu0 0.0
    %1342 = vmatprep.subr.mxu0 0.0
    %1343 = vmatpush1.msra.mxu0 0.0
    %1344 = vmatprep.subr.mxu0 0.0
    %1345 = vmatpush1.msra.mxu0 0.0
    %1346 = vmatprep.subr.mxu0 0.0
    %1347 = vmatpush1.msra.mxu0 0.0
    %1348 = vmatprep.subr.mxu0 0.0
    %1349 = vmatpush1.msra.mxu0 0.0
    %1350 = vmatprep.subr.mxu0 0.0
    %1351 = vmatpush1.msra.mxu0 0.0
    %1352 = vmatprep.subr.mxu0 0.0
    %1353 = vmatpush1.msra.mxu0 0.0
    %1354 = vmatprep.subr.mxu0 0.0
    %1355 = vmatpush1.msra.mxu0 0.0
    %1356 = vmatprep.subr.mxu0 0.0
    %1357 = vmatpush1.msra.mxu0 0.0
    %1358 = vmatprep.subr.mxu0 0.0
    %1359 = vmatpush1.msra.mxu0 0.0
    %1360 = vmatprep.subr.mxu0 0.0
    %1361 = vmatpush1.msra.mxu0 0.0
    %1362 = vmatprep.subr.mxu0 0.0
    %1363 = vmatpush1.msra.mxu0 0.0
    %1364 = vmatprep.subr.mxu0 0.0
    %1365 = vmatpush1.msra.mxu0 0.0
    %1366 = vmatprep.subr.mxu0 0.0
    %1367 = vmatpush1.msra.mxu0 0.0
    %1368 = vmatprep.subr.mxu0 0.0
    %1369 = vmatpush1.msra.mxu0 0.0
    %1370 = vmatprep.subr.mxu0 0.0
    %1371 = vmatpush1.msra.mxu0 0.0
    %1372 = vmatprep.subr.mxu0 0.0
    %1373 = vmatpush1.msra.mxu0 0.0
    %1374 = vmatprep.subr.mxu0 0.0
    %1375 = vmatpush1.msra.mxu0 0.0
    %1376 = vmatprep.subr.mxu0 0.0
    %1377 = vmatpush1.msra.mxu0 0.0
    %1378 = vmatprep.subr.mxu0 0.0
    %1379 = vmatpush1.msra.mxu0 0.0
    %1380 = vmatprep.subr.mxu0 0.0
    %1381 = vmatpush1.msra.mxu0 0.0
    %1382 = vmatprep.mubr.f32.mxu0 0.0
    %1383 = vmatmul.mubr.f32.gmra.mrb[0].mxu0 %v1316
    %v1384 = vpop.f32.mrb[0].mxu0
    %v1385 = vadd.f32 0.0, %v1384
    %v1386 = vpop.f32.mrb[0].mxu0
    %1387 = vdwg.mxu0
    %1388 = vrot.lane.b32.xlu0 %v386, 112
    %v1389 = vpop.permute.xlu0 %1388
    %v1392 = vsel %vm458, %v1151, 0
    %1394 = vmatprep.subr.mxu0 0.0
    %1395 = vmatpush1.msra.mxu0 %v1389
    %1396 = vmatprep.subr.mxu0 0.0
    %1397 = vmatpush1.msra.mxu0 0.0
    %1398 = vmatprep.subr.mxu0 0.0
    %1399 = vmatpush1.msra.mxu0 0.0
    %1400 = vmatprep.subr.mxu0 0.0
    %1401 = vmatpush1.msra.mxu0 0.0
    %1402 = vmatprep.subr.mxu0 0.0
    %1403 = vmatpush1.msra.mxu0 0.0
    %1404 = vmatprep.subr.mxu0 0.0
    %1405 = vmatpush1.msra.mxu0 0.0
    %1406 = vmatprep.subr.mxu0 0.0
    %1407 = vmatpush1.msra.mxu0 0.0
    %1408 = vmatprep.subr.mxu0 0.0
    %1409 = vmatpush1.msra.mxu0 0.0
    %1410 = vmatprep.subr.mxu0 0.0
    %1411 = vmatpush1.msra.mxu0 0.0
    %1412 = vmatprep.subr.mxu0 0.0
    %1413 = vmatpush1.msra.mxu0 0.0
    %1414 = vmatprep.subr.mxu0 0.0
    %1415 = vmatpush1.msra.mxu0 0.0
    %1416 = vmatprep.subr.mxu0 0.0
    %1417 = vmatpush1.msra.mxu0 0.0
    %1418 = vmatprep.subr.mxu0 0.0
    %1419 = vmatpush1.msra.mxu0 0.0
    %1420 = vmatprep.subr.mxu0 0.0
    %1421 = vmatpush1.msra.mxu0 0.0
    %1422 = vmatprep.subr.mxu0 0.0
    %1423 = vmatpush1.msra.mxu0 0.0
    %1424 = vmatprep.subr.mxu0 0.0
    %1425 = vmatpush1.msra.mxu0 0.0
    %1426 = vmatprep.subr.mxu0 0.0
    %1427 = vmatpush1.msra.mxu0 0.0
    %1428 = vmatprep.subr.mxu0 0.0
    %1429 = vmatpush1.msra.mxu0 0.0
    %1430 = vmatprep.subr.mxu0 0.0
    %1431 = vmatpush1.msra.mxu0 0.0
    %1432 = vmatprep.subr.mxu0 0.0
    %1433 = vmatpush1.msra.mxu0 0.0
    %1434 = vmatprep.subr.mxu0 0.0
    %1435 = vmatpush1.msra.mxu0 0.0
    %1436 = vmatprep.subr.mxu0 0.0
    %1437 = vmatpush1.msra.mxu0 0.0
    %1438 = vmatprep.subr.mxu0 0.0
    %1439 = vmatpush1.msra.mxu0 0.0
    %1440 = vmatprep.subr.mxu0 0.0
    %1441 = vmatpush1.msra.mxu0 0.0
    %1442 = vmatprep.subr.mxu0 0.0
    %1443 = vmatpush1.msra.mxu0 0.0
    %1444 = vmatprep.subr.mxu0 0.0
    %1445 = vmatpush1.msra.mxu0 0.0
    %1446 = vmatprep.subr.mxu0 0.0
    %1447 = vmatpush1.msra.mxu0 0.0
    %1448 = vmatprep.subr.mxu0 0.0
    %1449 = vmatpush1.msra.mxu0 0.0
    %1450 = vmatprep.subr.mxu0 0.0
    %1451 = vmatpush1.msra.mxu0 0.0
    %1452 = vmatprep.subr.mxu0 0.0
    %1453 = vmatpush1.msra.mxu0 0.0
    %1454 = vmatprep.subr.mxu0 0.0
    %1455 = vmatpush1.msra.mxu0 0.0
    %1456 = vmatprep.subr.mxu0 0.0
    %1457 = vmatpush1.msra.mxu0 0.0
    %1458 = vmatprep.mubr.f32.mxu0 0.0
    %1459 = vmatmul.mubr.f32.gmra.mrb[0].mxu0 %v1392
    %v1460 = vpop.f32.mrb[0].mxu0
    %v1461 = vadd.f32 0.0, %v1460
    %v1462 = vpop.f32.mrb[0].mxu0
    %1463 = vdwg.mxu0
    %1464 = vrot.lane.b32.xlu0 %v451, 112
    %v1465 = vpop.permute.xlu0 %1464
    %v1468 = vsel %vm458, %v1153, 0
    %1470 = vmatprep.subr.mxu0 0.0
    %1471 = vmatpush1.msra.mxu0 %v1465
    %1472 = vmatprep.subr.mxu0 0.0
    %1473 = vmatpush1.msra.mxu0 0.0
    %1474 = vmatprep.subr.mxu0 0.0
    %1475 = vmatpush1.msra.mxu0 0.0
    %1476 = vmatprep.subr.mxu0 0.0
    %1477 = vmatpush1.msra.mxu0 0.0
    %1478 = vmatprep.subr.mxu0 0.0
    %1479 = vmatpush1.msra.mxu0 0.0
    %1480 = vmatprep.subr.mxu0 0.0
    %1481 = vmatpush1.msra.mxu0 0.0
    %1482 = vmatprep.subr.mxu0 0.0
    %1483 = vmatpush1.msra.mxu0 0.0
    %1484 = vmatprep.subr.mxu0 0.0
    %1485 = vmatpush1.msra.mxu0 0.0
    %1486 = vmatprep.subr.mxu0 0.0
    %1487 = vmatpush1.msra.mxu0 0.0
    %1488 = vmatprep.subr.mxu0 0.0
    %1489 = vmatpush1.msra.mxu0 0.0
    %1490 = vmatprep.subr.mxu0 0.0
    %1491 = vmatpush1.msra.mxu0 0.0
    %1492 = vmatprep.subr.mxu0 0.0
    %1493 = vmatpush1.msra.mxu0 0.0
    %1494 = vmatprep.subr.mxu0 0.0
    %1495 = vmatpush1.msra.mxu0 0.0
    %1496 = vmatprep.subr.mxu0 0.0
    %1497 = vmatpush1.msra.mxu0 0.0
    %1498 = vmatprep.subr.mxu0 0.0
    %1499 = vmatpush1.msra.mxu0 0.0
    %1500 = vmatprep.subr.mxu0 0.0
    %1501 = vmatpush1.msra.mxu0 0.0
    %1502 = vmatprep.subr.mxu0 0.0
    %1503 = vmatpush1.msra.mxu0 0.0
    %1504 = vmatprep.subr.mxu0 0.0
    %1505 = vmatpush1.msra.mxu0 0.0
    %1506 = vmatprep.subr.mxu0 0.0
    %1507 = vmatpush1.msra.mxu0 0.0
    %1508 = vmatprep.subr.mxu0 0.0
    %1509 = vmatpush1.msra.mxu0 0.0
    %1510 = vmatprep.subr.mxu0 0.0
    %1511 = vmatpush1.msra.mxu0 0.0
    %1512 = vmatprep.subr.mxu0 0.0
    %1513 = vmatpush1.msra.mxu0 0.0
    %1514 = vmatprep.subr.mxu0 0.0
    %1515 = vmatpush1.msra.mxu0 0.0
    %1516 = vmatprep.subr.mxu0 0.0
    %1517 = vmatpush1.msra.mxu0 0.0
    %1518 = vmatprep.subr.mxu0 0.0
    %1519 = vmatpush1.msra.mxu0 0.0
    %1520 = vmatprep.subr.mxu0 0.0
    %1521 = vmatpush1.msra.mxu0 0.0
    %1522 = vmatprep.subr.mxu0 0.0
    %1523 = vmatpush1.msra.mxu0 0.0
    %1524 = vmatprep.subr.mxu0 0.0
    %1525 = vmatpush1.msra.mxu0 0.0
    %1526 = vmatprep.subr.mxu0 0.0
    %1527 = vmatpush1.msra.mxu0 0.0
    %1528 = vmatprep.subr.mxu0 0.0
    %1529 = vmatpush1.msra.mxu0 0.0
    %1530 = vmatprep.subr.mxu0 0.0
    %1531 = vmatpush1.msra.mxu0 0.0
    %1532 = vmatprep.subr.mxu0 0.0
    %1533 = vmatpush1.msra.mxu0 0.0
    %1534 = vmatprep.mubr.f32.mxu0 0.0
    %1535 = vmatmul.mubr.f32.gmra.mrb[0].mxu0 %v1468
    %v1536 = vpop.f32.mrb[0].mxu0
    %v1537 = vadd.f32 0.0, %v1536
    %v1538 = vpop.f32.mrb[0].mxu0
    %1539 = vdwg.mxu0
    %1540 = vrot.lane.b32.xlu0 %v452, 112
    %v1541 = vpop.permute.xlu0 %1540
    %v1544 = vsel %vm458, %v1155, 0
    %1546 = vmatprep.subr.mxu0 0.0
    %1547 = vmatpush1.msra.mxu0 %v1541
    %1548 = vmatprep.subr.mxu0 0.0
    %1549 = vmatpush1.msra.mxu0 0.0
    %1550 = vmatprep.subr.mxu0 0.0
    %1551 = vmatpush1.msra.mxu0 0.0
    %1552 = vmatprep.subr.mxu0 0.0
    %1553 = vmatpush1.msra.mxu0 0.0
    %1554 = vmatprep.subr.mxu0 0.0
    %1555 = vmatpush1.msra.mxu0 0.0
    %1556 = vmatprep.subr.mxu0 0.0
    %1557 = vmatpush1.msra.mxu0 0.0
    %1558 = vmatprep.subr.mxu0 0.0
    %1559 = vmatpush1.msra.mxu0 0.0
    %1560 = vmatprep.subr.mxu0 0.0
    %1561 = vmatpush1.msra.mxu0 0.0
    %1562 = vmatprep.subr.mxu0 0.0
    %1563 = vmatpush1.msra.mxu0 0.0
    %1564 = vmatprep.subr.mxu0 0.0
    %1565 = vmatpush1.msra.mxu0 0.0
    %1566 = vmatprep.subr.mxu0 0.0
    %1567 = vmatpush1.msra.mxu0 0.0
    %1568 = vmatprep.subr.mxu0 0.0
    %1569 = vmatpush1.msra.mxu0 0.0
    %1570 = vmatprep.subr.mxu0 0.0
    %1571 = vmatpush1.msra.mxu0 0.0
    %1572 = vmatprep.subr.mxu0 0.0
    %1573 = vmatpush1.msra.mxu0 0.0
    %1574 = vmatprep.subr.mxu0 0.0
    %1575 = vmatpush1.msra.mxu0 0.0
    %1576 = vmatprep.subr.mxu0 0.0
    %1577 = vmatpush1.msra.mxu0 0.0
    %1578 = vmatprep.subr.mxu0 0.0
    %1579 = vmatpush1.msra.mxu0 0.0
    %1580 = vmatprep.subr.mxu0 0.0
    %1581 = vmatpush1.msra.mxu0 0.0
    %1582 = vmatprep.subr.mxu0 0.0
    %1583 = vmatpush1.msra.mxu0 0.0
    %1584 = vmatprep.subr.mxu0 0.0
    %1585 = vmatpush1.msra.mxu0 0.0
    %1586 = vmatprep.subr.mxu0 0.0
    %1587 = vmatpush1.msra.mxu0 0.0
    %1588 = vmatprep.subr.mxu0 0.0
    %1589 = vmatpush1.msra.mxu0 0.0
    %1590 = vmatprep.subr.mxu0 0.0
    %1591 = vmatpush1.msra.mxu0 0.0
    %1592 = vmatprep.subr.mxu0 0.0
    %1593 = vmatpush1.msra.mxu0 0.0
    %1594 = vmatprep.subr.mxu0 0.0
    %1595 = vmatpush1.msra.mxu0 0.0
    %1596 = vmatprep.subr.mxu0 0.0
    %1597 = vmatpush1.msra.mxu0 0.0
    %1598 = vmatprep.subr.mxu0 0.0
    %1599 = vmatpush1.msra.mxu0 0.0
    %1600 = vmatprep.subr.mxu0 0.0
    %1601 = vmatpush1.msra.mxu0 0.0
    %1602 = vmatprep.subr.mxu0 0.0
    %1603 = vmatpush1.msra.mxu0 0.0
    %1604 = vmatprep.subr.mxu0 0.0
    %1605 = vmatpush1.msra.mxu0 0.0
    %1606 = vmatprep.subr.mxu0 0.0
    %1607 = vmatpush1.msra.mxu0 0.0
    %1608 = vmatprep.subr.mxu0 0.0
    %1609 = vmatpush1.msra.mxu0 0.0
    %1610 = vmatprep.mubr.f32.mxu0 0.0
    %1611 = vmatmul.mubr.f32.gmra.mrb[0].mxu0 %v1544
    %v1612 = vpop.f32.mrb[0].mxu0
    %v1613 = vadd.f32 0.0, %v1612
    %v1614 = vpop.f32.mrb[0].mxu0
    %1615 = vdwg.mxu0
    %1616 = vrot.lane.b32.xlu0 %v453, 112
    %v1617 = vpop.permute.xlu0 %1616
    %v1620 = vsel %vm458, %v1157, 0
    %1622 = vmatprep.subr.mxu0 0.0
    %1623 = vmatpush1.msra.mxu0 %v1617
    %1624 = vmatprep.subr.mxu0 0.0
    %1625 = vmatpush1.msra.mxu0 0.0
    %1626 = vmatprep.subr.mxu0 0.0
    %1627 = vmatpush1.msra.mxu0 0.0
    %1628 = vmatprep.subr.mxu0 0.0
    %1629 = vmatpush1.msra.mxu0 0.0
    %1630 = vmatprep.subr.mxu0 0.0
    %1631 = vmatpush1.msra.mxu0 0.0
    %1632 = vmatprep.subr.mxu0 0.0
    %1633 = vmatpush1.msra.mxu0 0.0
    %1634 = vmatprep.subr.mxu0 0.0
    %1635 = vmatpush1.msra.mxu0 0.0
    %1636 = vmatprep.subr.mxu0 0.0
    %1637 = vmatpush1.msra.mxu0 0.0
    %1638 = vmatprep.subr.mxu0 0.0
    %1639 = vmatpush1.msra.mxu0 0.0
    %1640 = vmatprep.subr.mxu0 0.0
    %1641 = vmatpush1.msra.mxu0 0.0
    %1642 = vmatprep.subr.mxu0 0.0
    %1643 = vmatpush1.msra.mxu0 0.0
    %1644 = vmatprep.subr.mxu0 0.0
    %1645 = vmatpush1.msra.mxu0 0.0
    %1646 = vmatprep.subr.mxu0 0.0
    %1647 = vmatpush1.msra.mxu0 0.0
    %1648 = vmatprep.subr.mxu0 0.0
    %1649 = vmatpush1.msra.mxu0 0.0
    %1650 = vmatprep.subr.mxu0 0.0
    %1651 = vmatpush1.msra.mxu0 0.0
    %1652 = vmatprep.subr.mxu0 0.0
    %1653 = vmatpush1.msra.mxu0 0.0
    %1654 = vmatprep.subr.mxu0 0.0
    %1655 = vmatpush1.msra.mxu0 0.0
    %1656 = vmatprep.subr.mxu0 0.0
    %1657 = vmatpush1.msra.mxu0 0.0
    %1658 = vmatprep.subr.mxu0 0.0
    %1659 = vmatpush1.msra.mxu0 0.0
    %1660 = vmatprep.subr.mxu0 0.0
    %1661 = vmatpush1.msra.mxu0 0.0
    %1662 = vmatprep.subr.mxu0 0.0
    %1663 = vmatpush1.msra.mxu0 0.0
    %1664 = vmatprep.subr.mxu0 0.0
    %1665 = vmatpush1.msra.mxu0 0.0
    %1666 = vmatprep.subr.mxu0 0.0
    %1667 = vmatpush1.msra.mxu0 0.0
    %1668 = vmatprep.subr.mxu0 0.0
    %1669 = vmatpush1.msra.mxu0 0.0
    %1670 = vmatprep.subr.mxu0 0.0
    %1671 = vmatpush1.msra.mxu0 0.0
    %1672 = vmatprep.subr.mxu0 0.0
    %1673 = vmatpush1.msra.mxu0 0.0
    %1674 = vmatprep.subr.mxu0 0.0
    %1675 = vmatpush1.msra.mxu0 0.0
    %1676 = vmatprep.subr.mxu0 0.0
    %1677 = vmatpush1.msra.mxu0 0.0
    %1678 = vmatprep.subr.mxu0 0.0
    %1679 = vmatpush1.msra.mxu0 0.0
    %1680 = vmatprep.subr.mxu0 0.0
    %1681 = vmatpush1.msra.mxu0 0.0
    %1682 = vmatprep.subr.mxu0 0.0
    %1683 = vmatpush1.msra.mxu0 0.0
    %1684 = vmatprep.subr.mxu0 0.0
    %1685 = vmatpush1.msra.mxu0 0.0
    %1686 = vmatprep.mubr.f32.mxu0 0.0
    %1687 = vmatmul.mubr.f32.gmra.mrb[0].mxu0 %v1620
    %v1688 = vpop.f32.mrb[0].mxu0
    %v1689 = vadd.f32 0.0, %v1688
    %v1690 = vpop.f32.mrb[0].mxu0
    %1691 = vdwg.mxu0
    %1692 = vrot.lane.b32.xlu0 %v454, 112
    %v1693 = vpop.permute.xlu0 %1692
    %v1696 = vsel %vm458, %v1159, 0
    %1698 = vmatprep.subr.mxu0 0.0
    %1699 = vmatpush1.msra.mxu0 %v1693
    %1700 = vmatprep.subr.mxu0 0.0
    %1701 = vmatpush1.msra.mxu0 0.0
    %1702 = vmatprep.subr.mxu0 0.0
    %1703 = vmatpush1.msra.mxu0 0.0
    %1704 = vmatprep.subr.mxu0 0.0
    %1705 = vmatpush1.msra.mxu0 0.0
    %1706 = vmatprep.subr.mxu0 0.0
    %1707 = vmatpush1.msra.mxu0 0.0
    %1708 = vmatprep.subr.mxu0 0.0
    %1709 = vmatpush1.msra.mxu0 0.0
    %1710 = vmatprep.subr.mxu0 0.0
    %1711 = vmatpush1.msra.mxu0 0.0
    %1712 = vmatprep.subr.mxu0 0.0
    %1713 = vmatpush1.msra.mxu0 0.0
    %1714 = vmatprep.subr.mxu0 0.0
    %1715 = vmatpush1.msra.mxu0 0.0
    %1716 = vmatprep.subr.mxu0 0.0
    %1717 = vmatpush1.msra.mxu0 0.0
    %1718 = vmatprep.subr.mxu0 0.0
    %1719 = vmatpush1.msra.mxu0 0.0
    %1720 = vmatprep.subr.mxu0 0.0
    %1721 = vmatpush1.msra.mxu0 0.0
    %1722 = vmatprep.subr.mxu0 0.0
    %1723 = vmatpush1.msra.mxu0 0.0
    %1724 = vmatprep.subr.mxu0 0.0
    %1725 = vmatpush1.msra.mxu0 0.0
    %1726 = vmatprep.subr.mxu0 0.0
    %1727 = vmatpush1.msra.mxu0 0.0
    %1728 = vmatprep.subr.mxu0 0.0
    %1729 = vmatpush1.msra.mxu0 0.0
    %1730 = vmatprep.subr.mxu0 0.0
    %1731 = vmatpush1.msra.mxu0 0.0
    %1732 = vmatprep.subr.mxu0 0.0
    %1733 = vmatpush1.msra.mxu0 0.0
    %1734 = vmatprep.subr.mxu0 0.0
    %1735 = vmatpush1.msra.mxu0 0.0
    %1736 = vmatprep.subr.mxu0 0.0
    %1737 = vmatpush1.msra.mxu0 0.0
    %1738 = vmatprep.subr.mxu0 0.0
    %1739 = vmatpush1.msra.mxu0 0.0
    %1740 = vmatprep.subr.mxu0 0.0
    %1741 = vmatpush1.msra.mxu0 0.0
    %1742 = vmatprep.subr.mxu0 0.0
    %1743 = vmatpush1.msra.mxu0 0.0
    %1744 = vmatprep.subr.mxu0 0.0
    %1745 = vmatpush1.msra.mxu0 0.0
    %1746 = vmatprep.subr.mxu0 0.0
    %1747 = vmatpush1.msra.mxu0 0.0
    %1748 = vmatprep.subr.mxu0 0.0
    %1749 = vmatpush1.msra.mxu0 0.0
    %1750 = vmatprep.subr.mxu0 0.0
    %1751 = vmatpush1.msra.mxu0 0.0
    %1752 = vmatprep.subr.mxu0 0.0
    %1753 = vmatpush1.msra.mxu0 0.0
    %1754 = vmatprep.subr.mxu0 0.0
    %1755 = vmatpush1.msra.mxu0 0.0
    %1756 = vmatprep.subr.mxu0 0.0
    %1757 = vmatpush1.msra.mxu0 0.0
    %1758 = vmatprep.subr.mxu0 0.0
    %1759 = vmatpush1.msra.mxu0 0.0
    %1760 = vmatprep.subr.mxu0 0.0
    %1761 = vmatpush1.msra.mxu0 0.0
    %1762 = vmatprep.mubr.f32.mxu0 0.0
    %1763 = vmatmul.mubr.f32.gmra.mrb[0].mxu0 %v1696
    %v1764 = vpop.f32.mrb[0].mxu0
    %v1765 = vadd.f32 0.0, %v1764
    %v1766 = vpop.f32.mrb[0].mxu0
    %1767 = vdwg.mxu0
    %v1768 = vcombine.low %v1233, %v1385
    %v1769 = vcombine.high %v1233, %v1385
    %v1771 = vunpack.c.l.s4 1983009808
    %v1772 = vunpack.c.0.s8 %v1771
    %v1773 = vlaneseq
    %v1774 = vshrl.u32 %v1773, 7
    %v1775 = vsub.s32 %v1772, %v1774
    %v1776 = vrot.slane %v1768, %v1775
    %v1778 = vunpack.c.l.s4 1983009808
    %v1779 = vunpack.c.0.s8 %v1778
    %v1780 = vlaneseq
    %v1781 = vshrl.u32 %v1780, 7
    %v1782 = vsub.s32 %v1779, %v1781
    %v1783 = vrot.slane %v1769, %v1782
    %v1784 = vcombine.low %v1309, %v1461
    %v1785 = vcombine.high %v1309, %v1461
    %v1787 = vunpack.c.l.s4 1983009808
    %v1788 = vunpack.c.0.s8 %v1787
    %v1789 = vlaneseq
    %v1790 = vshrl.u32 %v1789, 7
    %v1791 = vsub.s32 %v1788, %v1790
    %v1792 = vrot.slane %v1784, %v1791
    %v1794 = vunpack.c.l.s4 1983009808
    %v1795 = vunpack.c.0.s8 %v1794
    %v1796 = vlaneseq
    %v1797 = vshrl.u32 %v1796, 7
    %v1798 = vsub.s32 %v1795, %v1797
    %v1799 = vrot.slane %v1785, %v1798
    %v1800 = vcombine.low %v1776, %v1792
    %v1801 = vcombine.high %v1776, %v1792
    %v1803 = vunpack.c.l.s4 1934713408
    %v1804 = vunpack.c.0.s8 %v1803
    %v1805 = vlaneseq
    %v1806 = vshrl.u32 %v1805, 7
    %v1807 = vsub.s32 %v1804, %v1806
    %v1808 = vrot.slane %v1800, %v1807
    %v1810 = vunpack.c.l.s4 1934713408
    %v1811 = vunpack.c.0.s8 %v1810
    %v1812 = vlaneseq
    %v1813 = vshrl.u32 %v1812, 7
    %v1814 = vsub.s32 %v1811, %v1813
    %v1815 = vrot.slane %v1801, %v1814
    %v1816 = vcombine.low %v1783, %v1799
    %v1817 = vcombine.high %v1783, %v1799
    %v1819 = vunpack.c.l.s4 1934713408
    %v1820 = vunpack.c.0.s8 %v1819
    %v1821 = vlaneseq
    %v1822 = vshrl.u32 %v1821, 7
    %v1823 = vsub.s32 %v1820, %v1822
    %v1824 = vrot.slane %v1816, %v1823
    %v1826 = vunpack.c.l.s4 1934713408
    %v1827 = vunpack.c.0.s8 %v1826
    %v1828 = vlaneseq
    %v1829 = vshrl.u32 %v1828, 7
    %v1830 = vsub.s32 %v1827, %v1829
    %v1831 = vrot.slane %v1817, %v1830
    %v1832 = vcombine.high %v1808, 0.0
    %v1833 = vcombine.high %v1815, 0.0
    %v1834 = vcombine.high %v1824, 0.0
    %v1835 = vcombine.high %v1831, 0.0
    %v1836 = vcombine.low %v1537, %v1689
    %v1837 = vcombine.high %v1537, %v1689
    %v1839 = vunpack.c.l.s4 1983009808
    %v1840 = vunpack.c.0.s8 %v1839
    %v1841 = vlaneseq
    %v1842 = vshrl.u32 %v1841, 7
    %v1843 = vsub.s32 %v1840, %v1842
    %v1844 = vrot.slane %v1836, %v1843
    %v1846 = vunpack.c.l.s4 1983009808
    %v1847 = vunpack.c.0.s8 %v1846
    %v1848 = vlaneseq
    %v1849 = vshrl.u32 %v1848, 7
    %v1850 = vsub.s32 %v1847, %v1849
    %v1851 = vrot.slane %v1837, %v1850
    %v1852 = vcombine.low %v1613, %v1765
    %v1853 = vcombine.high %v1613, %v1765
    %v1855 = vunpack.c.l.s4 1983009808
    %v1856 = vunpack.c.0.s8 %v1855
    %v1857 = vlaneseq
    %v1858 = vshrl.u32 %v1857, 7
    %v1859 = vsub.s32 %v1856, %v1858
    %v1860 = vrot.slane %v1852, %v1859
    %v1862 = vunpack.c.l.s4 1983009808
    %v1863 = vunpack.c.0.s8 %v1862
    %v1864 = vlaneseq
    %v1865 = vshrl.u32 %v1864, 7
    %v1866 = vsub.s32 %v1863, %v1865
    %v1867 = vrot.slane %v1853, %v1866
    %v1868 = vcombine.low %v1844, %v1860
    %v1869 = vcombine.high %v1844, %v1860
    %v1871 = vunpack.c.l.s4 1934713408
    %v1872 = vunpack.c.0.s8 %v1871
    %v1873 = vlaneseq
    %v1874 = vshrl.u32 %v1873, 7
    %v1875 = vsub.s32 %v1872, %v1874
    %v1876 = vrot.slane %v1868, %v1875
    %v1878 = vunpack.c.l.s4 1934713408
    %v1879 = vunpack.c.0.s8 %v1878
    %v1880 = vlaneseq
    %v1881 = vshrl.u32 %v1880, 7
    %v1882 = vsub.s32 %v1879, %v1881
    %v1883 = vrot.slane %v1869, %v1882
    %v1884 = vcombine.low %v1851, %v1867
    %v1885 = vcombine.high %v1851, %v1867
    %v1887 = vunpack.c.l.s4 1934713408
    %v1888 = vunpack.c.0.s8 %v1887
    %v1889 = vlaneseq
    %v1890 = vshrl.u32 %v1889, 7
    %v1891 = vsub.s32 %v1888, %v1890
    %v1892 = vrot.slane %v1884, %v1891
    %v1894 = vunpack.c.l.s4 1934713408
    %v1895 = vunpack.c.0.s8 %v1894
    %v1896 = vlaneseq
    %v1897 = vshrl.u32 %v1896, 7
    %v1898 = vsub.s32 %v1895, %v1897
    %v1899 = vrot.slane %v1885, %v1898
    %v1900 = vcombine.high %v1876, 0.0
    %v1901 = vcombine.high %v1883, 0.0
    %v1902 = vcombine.high %v1892, 0.0
    %v1903 = vcombine.high %v1899, 0.0
    %v1904 = vcombine.low %v1808, %v1815
    %v1906 = vunpack.c.l.s4 1983009808
    %v1907 = vunpack.c.0.s8 %v1906
    %v1908 = vlaneseq
    %v1909 = vshrl.u32 %v1908, 7
    %v1910 = vsub.s32 %v1907, %v1909
    %v1911 = vrot.slane %v1904, %v1910
    %v1912 = vcombine.low %v1832, %v1833
    %v1914 = vunpack.c.l.s4 1983009808
    %v1915 = vunpack.c.0.s8 %v1914
    %v1916 = vlaneseq
    %v1917 = vshrl.u32 %v1916, 7
    %v1918 = vsub.s32 %v1915, %v1917
    %v1919 = vrot.slane %v1912, %v1918
    %v1920 = vcombine.low %v1824, %v1831
    %v1922 = vunpack.c.l.s4 1983009808
    %v1923 = vunpack.c.0.s8 %v1922
    %v1924 = vlaneseq
    %v1925 = vshrl.u32 %v1924, 7
    %v1926 = vsub.s32 %v1923, %v1925
    %v1927 = vrot.slane %v1920, %v1926
    %v1928 = vcombine.low %v1834, %v1835
    %v1930 = vunpack.c.l.s4 1983009808
    %v1931 = vunpack.c.0.s8 %v1930
    %v1932 = vlaneseq
    %v1933 = vshrl.u32 %v1932, 7
    %v1934 = vsub.s32 %v1931, %v1933
    %v1935 = vrot.slane %v1928, %v1934
    %v1936 = vcombine.low %v1911, %v1919
    %v1937 = vcombine.high %v1911, %v1919
    %v1939 = vunpack.c.l.s4 1934713408
    %v1940 = vunpack.c.0.s8 %v1939
    %v1941 = vlaneseq
    %v1942 = vshrl.u32 %v1941, 7
    %v1943 = vsub.s32 %v1940, %v1942
    %v1944 = vrot.slane %v1936, %v1943
    %v1946 = vunpack.c.l.s4 1934713408
    %v1947 = vunpack.c.0.s8 %v1946
    %v1948 = vlaneseq
    %v1949 = vshrl.u32 %v1948, 7
    %v1950 = vsub.s32 %v1947, %v1949
    %v1951 = vrot.slane %v1937, %v1950
    %v1952 = vcombine.low %v1927, %v1935
    %v1953 = vcombine.high %v1927, %v1935
    %v1955 = vunpack.c.l.s4 1934713408
    %v1956 = vunpack.c.0.s8 %v1955
    %v1957 = vlaneseq
    %v1958 = vshrl.u32 %v1957, 7
    %v1959 = vsub.s32 %v1956, %v1958
    %v1960 = vrot.slane %v1952, %v1959
    %v1962 = vunpack.c.l.s4 1934713408
    %v1963 = vunpack.c.0.s8 %v1962
    %v1964 = vlaneseq
    %v1965 = vshrl.u32 %v1964, 7
    %v1966 = vsub.s32 %v1963, %v1965
    %v1967 = vrot.slane %v1953, %v1966
    %v1968 = vcombine.low %v1944, %v1960
    %v1969 = vcombine.high %v1944, %v1960
    %v1970 = vcombine.low %v1951, %v1967
    %v1971 = vcombine.high %v1951, %v1967
    %v1972 = vcombine.low %v1876, %v1883
    %v1974 = vunpack.c.l.s4 1983009808
    %v1975 = vunpack.c.0.s8 %v1974
    %v1976 = vlaneseq
    %v1977 = vshrl.u32 %v1976, 7
    %v1978 = vsub.s32 %v1975, %v1977
    %v1979 = vrot.slane %v1972, %v1978
    %v1980 = vcombine.low %v1900, %v1901
    %v1982 = vunpack.c.l.s4 1983009808
    %v1983 = vunpack.c.0.s8 %v1982
    %v1984 = vlaneseq
    %v1985 = vshrl.u32 %v1984, 7
    %v1986 = vsub.s32 %v1983, %v1985
    %v1987 = vrot.slane %v1980, %v1986
    %v1988 = vcombine.low %v1892, %v1899
    %v1990 = vunpack.c.l.s4 1983009808
    %v1991 = vunpack.c.0.s8 %v1990
    %v1992 = vlaneseq
    %v1993 = vshrl.u32 %v1992, 7
    %v1994 = vsub.s32 %v1991, %v1993
    %v1995 = vrot.slane %v1988, %v1994
    %v1996 = vcombine.low %v1902, %v1903
    %v1998 = vunpack.c.l.s4 1983009808
    %v1999 = vunpack.c.0.s8 %v1998
    %v2000 = vlaneseq
    %v2001 = vshrl.u32 %v2000, 7
    %v2002 = vsub.s32 %v1999, %v2001
    %v2003 = vrot.slane %v1996, %v2002
    %v2004 = vcombine.low %v1979, %v1987
    %v2005 = vcombine.high %v1979, %v1987
    %v2007 = vunpack.c.l.s4 1934713408
    %v2008 = vunpack.c.0.s8 %v2007
    %v2009 = vlaneseq
    %v2010 = vshrl.u32 %v2009, 7
    %v2011 = vsub.s32 %v2008, %v2010
    %v2012 = vrot.slane %v2004, %v2011
    %v2014 = vunpack.c.l.s4 1934713408
    %v2015 = vunpack.c.0.s8 %v2014
    %v2016 = vlaneseq
    %v2017 = vshrl.u32 %v2016, 7
    %v2018 = vsub.s32 %v2015, %v2017
    %v2019 = vrot.slane %v2005, %v2018
    %v2020 = vcombine.low %v1995, %v2003
    %v2021 = vcombine.high %v1995, %v2003
    %v2023 = vunpack.c.l.s4 1934713408
    %v2024 = vunpack.c.0.s8 %v2023
    %v2025 = vlaneseq
    %v2026 = vshrl.u32 %v2025, 7
    %v2027 = vsub.s32 %v2024, %v2026
    %v2028 = vrot.slane %v2020, %v2027
    %v2030 = vunpack.c.l.s4 1934713408
    %v2031 = vunpack.c.0.s8 %v2030
    %v2032 = vlaneseq
    %v2033 = vshrl.u32 %v2032, 7
    %v2034 = vsub.s32 %v2031, %v2033
    %v2035 = vrot.slane %v2021, %v2034
    %v2036 = vcombine.low %v2012, %v2028
    %v2037 = vcombine.high %v2012, %v2028
    %v2038 = vcombine.low %v2019, %v2035
    %v2039 = vcombine.high %v2019, %v2035
    %2042 = vrot.lane.b32.xlu0 %v1969, 8
    %v2043 = vpop.permute.xlu0 %2042
    %2044 = vrot.lane.b32.xlu0 %v2037, 8
    %v2045 = vpop.permute.xlu0 %2044
    %2050 = vrot.lane.b32.xlu0 %v1970, 16
    %v2051 = vpop.permute.xlu0 %2050
    %2052 = vrot.lane.b32.xlu0 %v2038, 16
    %v2053 = vpop.permute.xlu0 %2052
    %2058 = vrot.lane.b32.xlu0 %v1971, 24
    %v2059 = vpop.permute.xlu0 %2058
    %2060 = vrot.lane.b32.xlu0 %v2039, 24
    %v2061 = vpop.permute.xlu0 %2060
    %v2064 = vsel %vm458, %v1968, %v2043
    %v2065 = vsel %vm458, %v2036, %v2045
    %vm2066 = vcmask 130048
    %v2067 = vsel %vm2066, %v2064, %v2051
    %v2068 = vsel %vm2066, %v2065, %v2053
    %vm2069 = vcmask 195584
    %v2070 = vsel %vm2069, %v2067, %v2059
    %v2071 = vsel %vm2069, %v2068, %v2061
    %v2072 = vld [vmem:[#allocation7] sm:$0xff]
    %v2073 = vld [vmem:[#allocation7 + $0x8] sm:$0xff]
    %v2074 = vld [vmem:[#allocation7 + $0x10] sm:$0xff]
    %v2075 = vld [vmem:[#allocation7 + $0x18] sm:$0xff]
    %v2076 = vld [vmem:[%s4] sm:$0x1]
    %v2078 = vlaneseq
    %v2079 = vshrl.u32 %v2078, 7
    %v2080 = vsub.s32 0, %v2079
    %v2081 = vrot.slane %v2076, %v2080
    %v2084 = vsel %vm81, %v2070, 0
    %v2087 = vsel %vm81, %v2071, 0
    %2089 = vmatprep.subr.mxu0 0.0
    %2090 = vmatpush1.msra.mxu0 %v2072
    %2091 = vmatprep.subr.mxu0 0.0
    %2092 = vmatpush1.msra.mxu0 %v2073
    %2093 = vmatprep.subr.mxu0 0.0
    %2094 = vmatpush1.msra.mxu0 %v2074
    %2095 = vmatprep.subr.mxu0 0.0
    %2096 = vmatpush1.msra.mxu0 %v2075
    %2097 = vmatprep.subr.mxu0 0.0
    %2098 = vmatpush1.msra.mxu0 0.0
    %2099 = vmatprep.subr.mxu0 0.0
    %2100 = vmatpush1.msra.mxu0 0.0
    %2101 = vmatprep.subr.mxu0 0.0
    %2102 = vmatpush1.msra.mxu0 0.0
    %2103 = vmatprep.subr.mxu0 0.0
    %2104 = vmatpush1.msra.mxu0 0.0
    %2105 = vmatprep.subr.mxu0 0.0
    %2106 = vmatpush1.msra.mxu0 0.0
    %2107 = vmatprep.subr.mxu0 0.0
    %2108 = vmatpush1.msra.mxu0 0.0
    %2109 = vmatprep.subr.mxu0 0.0
    %2110 = vmatpush1.msra.mxu0 0.0
    %2111 = vmatprep.subr.mxu0 0.0
    %2112 = vmatpush1.msra.mxu0 0.0
    %2113 = vmatprep.subr.mxu0 0.0
    %2114 = vmatpush1.msra.mxu0 0.0
    %2115 = vmatprep.subr.mxu0 0.0
    %2116 = vmatpush1.msra.mxu0 0.0
    %2117 = vmatprep.subr.mxu0 0.0
    %2118 = vmatpush1.msra.mxu0 0.0
    %2119 = vmatprep.subr.mxu0 0.0
    %2120 = vmatpush1.msra.mxu0 0.0
    %2121 = vmatprep.subr.mxu0 0.0
    %2122 = vmatpush1.msra.mxu0 0.0
    %2123 = vmatprep.subr.mxu0 0.0
    %2124 = vmatpush1.msra.mxu0 0.0
    %2125 = vmatprep.subr.mxu0 0.0
    %2126 = vmatpush1.msra.mxu0 0.0
    %2127 = vmatprep.subr.mxu0 0.0
    %2128 = vmatpush1.msra.mxu0 0.0
    %2129 = vmatprep.subr.mxu0 0.0
    %2130 = vmatpush1.msra.mxu0 0.0
    %2131 = vmatprep.subr.mxu0 0.0
    %2132 = vmatpush1.msra.mxu0 0.0
    %2133 = vmatprep.subr.mxu0 0.0
    %2134 = vmatpush1.msra.mxu0 0.0
    %2135 = vmatprep.subr.mxu0 0.0
    %2136 = vmatpush1.msra.mxu0 0.0
    %2137 = vmatprep.subr.mxu0 0.0
    %2138 = vmatpush1.msra.mxu0 0.0
    %2139 = vmatprep.subr.mxu0 0.0
    %2140 = vmatpush1.msra.mxu0 0.0
    %2141 = vmatprep.subr.mxu0 0.0
    %2142 = vmatpush1.msra.mxu0 0.0
    %2143 = vmatprep.subr.mxu0 0.0
    %2144 = vmatpush1.msra.mxu0 0.0
    %2145 = vmatprep.subr.mxu0 0.0
    %2146 = vmatpush1.msra.mxu0 0.0
    %2147 = vmatprep.subr.mxu0 0.0
    %2148 = vmatpush1.msra.mxu0 0.0
    %2149 = vmatprep.subr.mxu0 0.0
    %2150 = vmatpush1.msra.mxu0 0.0
    %2151 = vmatprep.subr.mxu0 0.0
    %2152 = vmatpush1.msra.mxu0 0.0
    %2153 = vmatprep.mubr.f32.mxu0 0.0
    %2154 = vmatmul.mubr.f32.gmra.mrb[0].mxu0 %v2084
    %v2155 = vpop.f32.mrb[0].mxu0
    %v2156 = vadd.f32 %v2081, %v2155
    %v2157 = vpop.f32.mrb[0].mxu0
    %2158 = vmatprep.mubr.f32.mxu0 0.0
    %2159 = vmatmul.mubr.f32.gmra.mrb[0].mxu0 %v2087
    %v2160 = vpop.f32.mrb[0].mxu0
    %v2161 = vadd.f32 %v2081, %v2160
    %v2162 = vpop.f32.mrb[0].mxu0
    %2163 = vdwg.mxu0
    %v2164 = vadd.f32 %v2156, %v68
    %v2165 = vadd.f32 %v2161, %v69
    %v2166 = vsel %vm81, %v2164, 0.0
    %2167 = vadd.xlane.f32.xlu0 %v2166
    %v2168 = vpop.xlane.xlu0 %2167
    %v2169 = vsel %vm81, %v2165, 0.0
    %2170 = vadd.xlane.f32.xlu0 %v2169
    %v2171 = vpop.xlane.xlu0 %2170
    %v2172 = vrcp.pop 32.0
    %v2173 = vmul.f32 %v2168, %v2172
    %v2174 = vmul.f32 %v2171, %v2172
    %v2175 = vsub.f32 %v2164, %v2173
    %v2176 = vsub.f32 %v2165, %v2174
    %v2177 = vmul.f32 %v2175, %v2175
    %v2178 = vmul.f32 %v2176, %v2176
    %v2179 = vsel %vm81, %v2177, 0.0
    %2180 = vadd.xlane.f32.xlu0 %v2179
    %v2181 = vpop.xlane.xlu0 %2180
    %v2182 = vsel %vm81, %v2178, 0.0
    %2183 = vadd.xlane.f32.xlu0 %v2182
    %v2184 = vpop.xlane.xlu0 %2183
    %v2185 = vmul.f32 %v2181, %v2172
    %v2186 = vmul.f32 %v2184, %v2172
    %v2187 = vadd.f32 %v2185, 1e-05
    %v2188 = vadd.f32 %v2186, 1e-05
    %v2189 = vrsqrt.pop %v2187
    %v2190 = vrsqrt.pop %v2188
    %v2191 = vmul.f32 %v2175, %v2189
    %v2192 = vmul.f32 %v2176, %v2190
    %v2193 = vld [vmem:[%s5] sm:$0x1]
    %v2195 = vlaneseq
    %v2196 = vshrl.u32 %v2195, 7
    %v2197 = vsub.s32 0, %v2196
    %v2198 = vrot.slane %v2193, %v2197
    %v2200 = vmul.f32 %v2191, %v2198
    %v2201 = vmul.f32 %v2192, %v2198
    %v2202 = vld [vmem:[%s6] sm:$0x1]
    %v2204 = vlaneseq
    %v2205 = vshrl.u32 %v2204, 7
    %v2206 = vsub.s32 0, %v2205
    %v2207 = vrot.slane %v2202, %v2206
    %v2209 = vadd.f32 %v2200, %v2207
    %v2210 = vadd.f32 %v2201, %v2207
    %2211 = vst.msk [vmem:[#allocation8] sm:$0xff] %vm81, %v2209
    %2212 = vst.msk [vmem:[#allocation8 + $0x8] sm:$0xff] %vm81, %v2210
    // Predicated region
    $region42: #{tpu_custom_call.1} parent=1 // pred_check
      _
    $region43: #{tpu_custom_call.1} parent=1 // pred_check_branch
      %2214 = sbr.rel (0) target = $region45
    $region44: #{tpu_custom_call.1} parent=1 // pred_region
      %s2216 = ssub.s32 256, 256
      %2217 = vsyncadd [#allocation4], %s2216
      %s2218 = sshll.u32 [#allocation8], 4
      %s2219 = int_to_ptr.vmem [resolvable:$true] %s2218
      %2224 = dma.vmem_to_hbm [thread:$0]  %s2219, 256, %s7, [#allocation4], 128, 128, 8
    $region45: #{tpu_custom_call.1} parent=1 // pred_fallthru
      _
    // Predicated region
    $region46: #{tpu_custom_call.1} parent=1 // pred_check
      _
    $region47: #{tpu_custom_call.1} parent=1 // pred_check_branch
      %2226 = sbr.rel (0) target = $region49
    $region48: #{tpu_custom_call.1} parent=1 // pred_region
      %2227 = dma.done [#allocation4], 256
    $region49: #{tpu_custom_call.1} parent=1 // pred_fallthru
      _
    %2228 = vsyncpa [#allocation3], 1
    %2229 = vsyncpa [#allocation6], 1
    %2230 = vsyncpa [#allocation4], 1

</llo_original>
